<compile_context>
chip_gen: v7x
topology: tpu7x:2x2x1
jax: 0.10.0
libtpu: 0.0.40
codegen_flags: <defaults>
</compile_context>

<pallas_src>
import jax
import jax.numpy as jnp
from jax.experimental import pallas as pl
from jax.experimental.pallas import tpu as pltpu

IN_FEATURES = 3 * 32 * 32     # 3072
HIDDEN = 200
HIDDEN_PAD = 256              # MXU / lane aligned hidden width
OUT = 10
OUT_PAD = 128                 # lane-dense output block


def _round_up(x, m):
    return (x + m - 1) // m * m


def _pick_tb(batch, tb_max=512):
    """Batch tile: multiple of 8 sublanes, capped at tb_max (f32 streaming fits the
    48 MiB VMEM budget on v5e/v6e/v7x), and >=2 grid steps for medium/large batches
    so the 'parallel' axis can shard across both v7x TensorCores."""
    if batch <= 16:
        return _round_up(batch, 8)
    n_tiles = max(2, pl.cdiv(batch, tb_max))
    return min(tb_max, _round_up(pl.cdiv(batch, n_tiles), 8))


def mlp_kernel(x_ref, w1_ref, b1_ref, w2_ref, b2_ref, w3_ref, b3_ref, o_ref):
    # x_ref: (TB, 3072) f32 streamed from HBM; cast to bf16 in-kernel (VPU) so the
    # wrapper never does a separate HBM round trip just to change dtype.
    x = x_ref[...].astype(jnp.bfloat16)
    h1 = jnp.dot(x, w1_ref[...], preferred_element_type=jnp.float32)        # (TB, 256)
    h1 = jnp.maximum(h1 + b1_ref[...], 0.0)
    h2 = jnp.dot(h1.astype(jnp.bfloat16), w2_ref[...],
                 preferred_element_type=jnp.float32)                        # (TB, 256)
    h2 = jnp.maximum(h2 + b2_ref[...], 0.0)
    h3 = jnp.dot(h2.astype(jnp.bfloat16), w3_ref[...],
                 preferred_element_type=jnp.float32)                        # (TB, 128)
    o_ref[...] = (h3 + b3_ref[...]).astype(o_ref.dtype)                     # bf16 store


def prepare_params(params):
    """Pad (in,out)/(out,) params to MXU-aligned bf16/f32 blocks.  Call once,
    outside the hot path.  NOTE: PyTorch nn.Linear stores weight as (out, in);
    these weights are (in, out) -- transpose when importing a torch state_dict."""
    w1, b1, w2, b2, w3, b3 = params
    w1p = jnp.pad(w1, ((0, 0), (0, HIDDEN_PAD - HIDDEN))).astype(jnp.bfloat16)
    b1p = jnp.pad(b1.reshape(1, -1), ((0, 0), (0, HIDDEN_PAD - HIDDEN)))
    w2p = jnp.pad(w2, ((0, HIDDEN_PAD - HIDDEN),
                       (0, HIDDEN_PAD - HIDDEN))).astype(jnp.bfloat16)
    b2p = jnp.pad(b2.reshape(1, -1), ((0, 0), (0, HIDDEN_PAD - HIDDEN)))
    w3p = jnp.pad(w3, ((0, HIDDEN_PAD - HIDDEN),
                       (0, OUT_PAD - OUT))).astype(jnp.bfloat16)
    b3p = jnp.pad(b3.reshape(1, -1), ((0, 0), (0, OUT_PAD - OUT)))
    return w1p, b1p, w2p, b2p, w3p, b3p


def net_forward(x, prepared, tb_max=512):
    """x: (B, 3, 32, 32) float32 NCHW; prepared = prepare_params(params).
    Returns (B, 10) float32 logits."""
    w1p, b1p, w2p, b2p, w3p, b3p = prepared

    B = x.shape[0]
    # Same flattening order as torch .view; stays f32 -- no wrapper-side cast or pad copy.
    x_flat = x.reshape(B, IN_FEATURES)

    tb = _pick_tb(B, tb_max)
    n_tiles = pl.cdiv(B, tb)       # ragged last tile: OOB input rows are undefined,
                                   # their output rows are sliced away below.
    b_out = n_tiles * tb           # kernel-allocated output pad (not a copy of x)
                                   # -> every output store is a full, unmasked block.

    weight_bytes = sum(int(a.size) * a.dtype.itemsize
                       for a in (w1p, b1p, w2p, b2p, w3p, b3p))
    cost = pl.CostEstimate(
        flops=2 * B * (IN_FEATURES * HIDDEN_PAD
                       + HIDDEN_PAD * HIDDEN_PAD
                       + HIDDEN_PAD * OUT_PAD),
        transcendentals=0,
        bytes_accessed=B * (IN_FEATURES * 4 + OUT_PAD * 2) + weight_bytes,
    )

    out = pl.pallas_call(
        mlp_kernel,
        out_shape=jax.ShapeDtypeStruct((b_out, OUT_PAD), jnp.bfloat16),
        grid=(n_tiles,),
        in_specs=[
            pl.BlockSpec((tb, IN_FEATURES), lambda i: (i, 0)),  # x: streamed f32 per batch tile
            pl.BlockSpec(w1p.shape, lambda i: (0, 0)),          # weights/biases: constant index
            pl.BlockSpec(b1p.shape, lambda i: (0, 0)),          #   -> DMA'd once, VMEM-resident
            pl.BlockSpec(w2p.shape, lambda i: (0, 0)),
            pl.BlockSpec(b2p.shape, lambda i: (0, 0)),
            pl.BlockSpec(w3p.shape, lambda i: (0, 0)),
            pl.BlockSpec(b3p.shape, lambda i: (0, 0)),
        ],
        out_specs=pl.BlockSpec((tb, OUT_PAD), lambda i: (i, 0)),
        compiler_params=pltpu.CompilerParams(
            dimension_semantics=("parallel",),   # megacore-shard the batch grid
            vmem_limit_bytes=48 << 20),          # 2x6 MiB f32 x buffers + ~3.4 MiB weights at tb=512
        cost_estimate=cost,
    )(x_flat, w1p, b1p, w2p, b2p, w3p, b3p)

    return out[:B, :OUT].astype(jnp.float32)


def init_params(key):
    """Deterministic init matching the torch module's shapes (weights kept as (in, out))."""
    dims = [(IN_FEATURES, HIDDEN), (HIDDEN, HIDDEN), (HIDDEN, OUT)]
    params = []
    for fan_in, fan_out in dims:
        kw, kb, key = jax.random.split(key, 3)
        bound = 1.0 / jnp.sqrt(fan_in)
        w = jax.random.uniform(kw, (fan_in, fan_out), jnp.float32, -bound, bound)
        b = jax.random.uniform(kb, (fan_out,), jnp.float32, -bound, bound)
        params += [w, b]
    return tuple(params)


def net_forward_ref_f32(x, params):
    """Full-precision reference (torch semantics)."""
    w1, b1, w2, b2, w3, b3 = params
    h = x.reshape(x.shape[0], -1)
    h = jnp.maximum(h @ w1 + b1, 0.0)
    h = jnp.maximum(h @ w2 + b2, 0.0)
    return h @ w3 + b3


def net_forward_ref_bf16(x, params):
    """Precision-matched reference: bf16 matmul inputs, f32 accumulation, bf16 output."""
    w1, b1, w2, b2, w3, b3 = params
    bf = jnp.bfloat16
    h = x.reshape(x.shape[0], -1).astype(bf)
    h = jnp.maximum(
        jnp.dot(h, w1.astype(bf), preferred_element_type=jnp.float32) + b1, 0.0)
    h = jnp.maximum(
        jnp.dot(h.astype(bf), w2.astype(bf), preferred_element_type=jnp.float32) + b2, 0.0)
    o = jnp.dot(h.astype(bf), w3.astype(bf), preferred_element_type=jnp.float32) + b3
    return o.astype(bf).astype(jnp.float32)


if __name__ == "__main__":
    key = jax.random.PRNGKey(0)
    kx, kp = jax.random.split(key)
    x = jax.random.normal(kx, (2, 3, 32, 32), jnp.float32)   # small CIFAR-like NCHW batch
    params = init_params(kp)
    prepared = prepare_params(params)                        # one-time, outside the hot path

    out = jax.block_until_ready(net_forward(x, prepared))
    assert out.shape == (2, OUT)

    ref_match = net_forward_ref_bf16(x, params)   # same precision recipe as the kernel
    ref_f32 = net_forward_ref_f32(x, params)      # torch-semantics f32 reference
    assert jnp.allclose(out, ref_match, atol=2e-2, rtol=2e-2), "mismatch vs bf16 reference"
    assert jnp.allclose(out, ref_f32, atol=5e-2, rtol=5e-2), "mismatch vs f32 reference"

    print("KERNEL_OK")
</pallas_src>

<mosaic_0001>
module attributes {stable_mosaic.version = 11 : i64} {
  func.func @mlp_kernel(%arg0: i32, %arg1: memref<8x3072xf32, #tpu.memory_space<vmem>>, %arg2: memref<3072x256xbf16, #tpu.memory_space<vmem>>, %arg3: memref<1x256xf32, #tpu.memory_space<vmem>>, %arg4: memref<256x256xbf16, #tpu.memory_space<vmem>>, %arg5: memref<1x256xf32, #tpu.memory_space<vmem>>, %arg6: memref<256x128xbf16, #tpu.memory_space<vmem>>, %arg7: memref<1x128xf32, #tpu.memory_space<vmem>>, %arg8: memref<8x128xbf16, #tpu.memory_space<vmem>>) attributes {dimension_semantics = [#tpu.dimension_semantics<parallel>], iteration_bounds = array<i64: 1>, scalar_prefetch = 0 : i64, scratch_operands = 0 : i64, tpu.core_type = #tpu.core_type<tc>, window_params = [{transform_indices = @transform_0, window_bounds = array<i64: 8, 3072>}, {pipeline_mode = #tpu.pipeline_mode<synchronous>, transform_indices = @transform_1, window_bounds = array<i64: 3072, 256>}, {pipeline_mode = #tpu.pipeline_mode<synchronous>, transform_indices = @transform_2, window_bounds = array<i64: 1, 256>}, {pipeline_mode = #tpu.pipeline_mode<synchronous>, transform_indices = @transform_3, window_bounds = array<i64: 256, 256>}, {pipeline_mode = #tpu.pipeline_mode<synchronous>, transform_indices = @transform_4, window_bounds = array<i64: 1, 256>}, {pipeline_mode = #tpu.pipeline_mode<synchronous>, transform_indices = @transform_5, window_bounds = array<i64: 256, 128>}, {pipeline_mode = #tpu.pipeline_mode<synchronous>, transform_indices = @transform_6, window_bounds = array<i64: 1, 128>}, {transform_indices = @transform_7, window_bounds = array<i64: 8, 128>}]} {
    %c0 = arith.constant 0 : index
    %c0_0 = arith.constant 0 : index
    %0 = vector.load %arg1[%c0, %c0_0] : memref<8x3072xf32, #tpu.memory_space<vmem>>, vector<8x3072xf32>
    %1 = arith.truncf %0 : vector<8x3072xf32> to vector<8x3072xbf16>
    %c0_1 = arith.constant 0 : index
    %c0_2 = arith.constant 0 : index
    %2 = vector.load %arg2[%c0_1, %c0_2] : memref<3072x256xbf16, #tpu.memory_space<vmem>>, vector<3072x256xbf16>
    %cst = arith.constant dense<0.000000e+00> : vector<8x256xf32>
    %3 = tpu.matmul %1, %2, %cst {dimension_numbers = #tpu.dot_dimension_numbers<[1], [0], [0], [1], [0, 0, 1, 1], [], []>} : vector<8x3072xbf16>, vector<3072x256xbf16>, vector<8x256xf32> -> vector<8x256xf32>
    %c0_3 = arith.constant 0 : index
    %c0_4 = arith.constant 0 : index
    %4 = vector.load %arg3[%c0_3, %c0_4] : memref<1x256xf32, #tpu.memory_space<vmem>>, vector<1x256xf32>
    %5 = vector.broadcast %4 : vector<1x256xf32> to vector<8x256xf32>
    %6 = arith.addf %3, %5 : vector<8x256xf32>
    %cst_5 = arith.constant 0.000000e+00 : f32
    %7 = vector.broadcast %cst_5 : f32 to vector<8x256xf32>
    %8 = arith.maximumf %6, %7 : vector<8x256xf32>
    %9 = arith.truncf %8 : vector<8x256xf32> to vector<8x256xbf16>
    %c0_6 = arith.constant 0 : index
    %c0_7 = arith.constant 0 : index
    %10 = vector.load %arg4[%c0_6, %c0_7] : memref<256x256xbf16, #tpu.memory_space<vmem>>, vector<256x256xbf16>
    %cst_8 = arith.constant dense<0.000000e+00> : vector<8x256xf32>
    %11 = tpu.matmul %9, %10, %cst_8 {dimension_numbers = #tpu.dot_dimension_numbers<[1], [0], [0], [1], [0, 0, 1, 1], [], []>} : vector<8x256xbf16>, vector<256x256xbf16>, vector<8x256xf32> -> vector<8x256xf32>
    %c0_9 = arith.constant 0 : index
    %c0_10 = arith.constant 0 : index
    %12 = vector.load %arg5[%c0_9, %c0_10] : memref<1x256xf32, #tpu.memory_space<vmem>>, vector<1x256xf32>
    %13 = vector.broadcast %12 : vector<1x256xf32> to vector<8x256xf32>
    %14 = arith.addf %11, %13 : vector<8x256xf32>
    %cst_11 = arith.constant 0.000000e+00 : f32
    %15 = vector.broadcast %cst_11 : f32 to vector<8x256xf32>
    %16 = arith.maximumf %14, %15 : vector<8x256xf32>
    %17 = arith.truncf %16 : vector<8x256xf32> to vector<8x256xbf16>
    %c0_12 = arith.constant 0 : index
    %c0_13 = arith.constant 0 : index
    %18 = vector.load %arg6[%c0_12, %c0_13] : memref<256x128xbf16, #tpu.memory_space<vmem>>, vector<256x128xbf16>
    %cst_14 = arith.constant dense<0.000000e+00> : vector<8x128xf32>
    %19 = tpu.matmul %17, %18, %cst_14 {dimension_numbers = #tpu.dot_dimension_numbers<[1], [0], [0], [1], [0, 0, 1, 1], [], []>} : vector<8x256xbf16>, vector<256x128xbf16>, vector<8x128xf32> -> vector<8x128xf32>
    %c0_15 = arith.constant 0 : index
    %c0_16 = arith.constant 0 : index
    %20 = vector.load %arg7[%c0_15, %c0_16] : memref<1x128xf32, #tpu.memory_space<vmem>>, vector<1x128xf32>
    %21 = vector.broadcast %20 : vector<1x128xf32> to vector<8x128xf32>
    %22 = arith.addf %19, %21 : vector<8x128xf32>
    %23 = arith.truncf %22 : vector<8x128xf32> to vector<8x128xbf16>
    %c0_17 = arith.constant 0 : index
    %c0_18 = arith.constant 0 : index
    %24 = vector.load %arg8[%c0_17, %c0_18] : memref<8x128xbf16, #tpu.memory_space<vmem>>, vector<8x128xbf16>
    tpu.vector_store %arg8[%c0_17, %c0_18], %23 {strides = array<i32>} : memref<8x128xbf16, #tpu.memory_space<vmem>>, vector<8x128xbf16>,
    return
  }
  func.func @transform_0(%arg0: i32) -> (i32, i32) {
    %c0_i32 = arith.constant 0 : i32
    %c0_i32_0 = arith.constant 0 : i32
    return %arg0, %c0_i32 : i32, i32
  }
  func.func @transform_1(%arg0: i32) -> (i32, i32) {
    %c0_i32 = arith.constant 0 : i32
    %c0_i32_0 = arith.constant 0 : i32
    %c0_i32_1 = arith.constant 0 : i32
    return %c0_i32, %c0_i32_0 : i32, i32
  }
  func.func @transform_2(%arg0: i32) -> (i32, i32) {
    %c0_i32 = arith.constant 0 : i32
    %c0_i32_0 = arith.constant 0 : i32
    %c0_i32_1 = arith.constant 0 : i32
    return %c0_i32, %c0_i32_0 : i32, i32
  }
  func.func @transform_3(%arg0: i32) -> (i32, i32) {
    %c0_i32 = arith.constant 0 : i32
    %c0_i32_0 = arith.constant 0 : i32
    %c0_i32_1 = arith.constant 0 : i32
    return %c0_i32, %c0_i32_0 : i32, i32
  }
  func.func @transform_4(%arg0: i32) -> (i32, i32) {
    %c0_i32 = arith.constant 0 : i32
    %c0_i32_0 = arith.constant 0 : i32
    %c0_i32_1 = arith.constant 0 : i32
    return %c0_i32, %c0_i32_0 : i32, i32
  }
  func.func @transform_5(%arg0: i32) -> (i32, i32) {
    %c0_i32 = arith.constant 0 : i32
    %c0_i32_0 = arith.constant 0 : i32
    %c0_i32_1 = arith.constant 0 : i32
    return %c0_i32, %c0_i32_0 : i32, i32
  }
  func.func @transform_6(%arg0: i32) -> (i32, i32) {
    %c0_i32 = arith.constant 0 : i32
    %c0_i32_0 = arith.constant 0 : i32
    %c0_i32_1 = arith.constant 0 : i32
    return %c0_i32, %c0_i32_0 : i32, i32
  }
  func.func @transform_7(%arg0: i32) -> (i32, i32) {
    %c0_i32 = arith.constant 0 : i32
    %c0_i32_0 = arith.constant 0 : i32
    return %arg0, %c0_i32 : i32, i32
  }
}

</mosaic_0001>

<llo_original>
// kernel: tpu_custom_call.1
$region0: #{tpu_custom_call.1}
  #allocation0 [shape = 'u32[]', space=smem, size = 0x4, offset = 0x4, fixed_abs, tag = 'smem constant byte address 0x4 - core index']
  #allocation1 [shape = 'u32[144,128]{1,0:T(1,128)}', space=vmem, size = 0x12000, scoped, tag = 'internal scratch']
  %s0 = inlined_call_operand.hbm [shape: f32[2,3072], index: 0, kind: input, shape index: {}]
  %s1 = inlined_call_operand.hbm [shape: bf16[3072,256], index: 1, kind: input, shape index: {}]
  %s2 = inlined_call_operand.hbm [shape: f32[1,256], index: 2, kind: input, shape index: {}]
  %s3 = inlined_call_operand.hbm [shape: bf16[256,256], index: 3, kind: input, shape index: {}]
  %s4 = inlined_call_operand.hbm [shape: f32[1,256], index: 4, kind: input, shape index: {}]
  %s5 = inlined_call_operand.hbm [shape: bf16[256,128], index: 5, kind: input, shape index: {}]
  %s6 = inlined_call_operand.hbm [shape: f32[1,128], index: 6, kind: input, shape index: {}]
  %s7 = inlined_call_operand.hbm [shape: bf16[8,128], index: 7, kind: output, shape index: {}]
  %s8 = sld [smem:[#allocation0]]
  $region66: #{tpu_custom_call.1} parent=0
    _
  %s10 = ssub.s32 1, %s8
  %s11 = scalar_select 0, %s10, %s8
  $region1: #{tpu_custom_call.1} parent=0
    #allocation2 [shape = 'u8[98304]{0}', space=vmem, size = 0x18000, scoped, tag = 'input window, operand 0, single buffered']
    #allocation3 [shape = 's32[1]{0}', space=sflag, size = 0x4, scoped, tag = 'scoped memory for tpu_custom_call.1']
    #allocation4 [shape = 's32[1]{0}', space=sflag, size = 0x4, scoped, tag = 'scoped memory for tpu_custom_call.1']
    #allocation5 [shape = 'u8[1572864]{0}', space=vmem, size = 0x180000, scoped, tag = 'input window, operand 1, single buffered']
    #allocation6 [shape = 's32[1]{0}', space=sflag, size = 0x4, scoped, tag = 'scoped memory for tpu_custom_call.1']
    #allocation7 [shape = 'u8[1024]{0}', space=vmem, size = 0x400, scoped, tag = 'input window, operand 2, single buffered']
    #allocation8 [shape = 'u8[131072]{0}', space=vmem, size = 0x20000, scoped, tag = 'input window, operand 3, single buffered']
    #allocation9 [shape = 's32[1]{0}', space=sflag, size = 0x4, scoped, tag = 'scoped memory for tpu_custom_call.1']
    #allocation10 [shape = 'u8[1024]{0}', space=vmem, size = 0x400, scoped, tag = 'input window, operand 4, single buffered']
    #allocation11 [shape = 'u8[65536]{0}', space=vmem, size = 0x10000, scoped, tag = 'input window, operand 5, single buffered']
    #allocation12 [shape = 's32[1]{0}', space=sflag, size = 0x4, scoped, tag = 'scoped memory for tpu_custom_call.1']
    #allocation13 [shape = 'u8[512]{0}', space=vmem, size = 0x400, scoped, tag = 'input window, operand 6, single buffered']
    #allocation14 [shape = 'u8[2048]{0}', space=vmem, size = 0x800, scoped, tag = 'output window, operand 0, single buffered']
    %12 = vsyncpa [#allocation3], 0
    %13 = vsyncpa [#allocation6], 0
    %14 = vsyncpa [#allocation9], 0
    %15 = vsyncpa [#allocation12], 0
    %16 = vsyncpa [#allocation4], 0
    // Predicated region
    $region2: #{tpu_custom_call.1} parent=1 // pred_check
      _
    $region3: #{tpu_custom_call.1} parent=1 // pred_check_branch
      %18 = sbr.rel (0) target = $region5
    $region4: #{tpu_custom_call.1} parent=1 // pred_region
      %s20 = ssub.s32 3072, 768
      %21 = vsyncadd [#allocation3], %s20
      %s22 = sshll.u32 [#allocation2], 4
      %s23 = int_to_ptr.vmem [resolvable:$true] %s22
      %28 = dma.hbm_to_vmem [thread:$0]  %s0, 768, %s23, [#allocation3], 768, 768, 48
    $region5: #{tpu_custom_call.1} parent=1 // pred_fallthru
      _
    // Predicated region
    $region6: #{tpu_custom_call.1} parent=1 // pred_check
      _
    $region7: #{tpu_custom_call.1} parent=1 // pred_check_branch
      %30 = sbr.rel (0) target = $region9
    $region8: #{tpu_custom_call.1} parent=1 // pred_region
      %s32 = ssub.s32 49152, 49152
      %33 = vsyncadd [#allocation6], %s32
      %s34 = sshll.u32 [#allocation5], 4
      %s35 = int_to_ptr.vmem [resolvable:$true] %s34
      %40 = dma.hbm_to_vmem [thread:$0]  %s1, 49152, %s35, [#allocation6], 128, 128, 8
    $region9: #{tpu_custom_call.1} parent=1 // pred_fallthru
      _
    // Predicated region
    $region10: #{tpu_custom_call.1} parent=1 // pred_check
      _
    $region11: #{tpu_custom_call.1} parent=1 // pred_check_branch
      %42 = sbr.rel (0) target = $region13
    $region12: #{tpu_custom_call.1} parent=1 // pred_region
      %s44 = ssub.s32 32, 32
      %45 = vsyncadd [#allocation6], %s44
      %s47 = sshll.u32 [#allocation7], 4
      %s48 = int_to_ptr.vmem [resolvable:$true] %s47
      %50 = dma.hbm_to_vmem [thread:$0]  %s2, 32, %s48, [#allocation6]
    $region13: #{tpu_custom_call.1} parent=1 // pred_fallthru
      _
    // Predicated region
    $region14: #{tpu_custom_call.1} parent=1 // pred_check
      _
    $region15: #{tpu_custom_call.1} parent=1 // pred_check_branch
      %52 = sbr.rel (0) target = $region17
    $region16: #{tpu_custom_call.1} parent=1 // pred_region
      %s54 = ssub.s32 4096, 4096
      %55 = vsyncadd [#allocation9], %s54
      %s56 = sshll.u32 [#allocation8], 4
      %s57 = int_to_ptr.vmem [resolvable:$true] %s56
      %62 = dma.hbm_to_vmem [thread:$0]  %s3, 4096, %s57, [#allocation9], 128, 128, 8
    $region17: #{tpu_custom_call.1} parent=1 // pred_fallthru
      _
    // Predicated region
    $region18: #{tpu_custom_call.1} parent=1 // pred_check
      _
    $region19: #{tpu_custom_call.1} parent=1 // pred_check_branch
      %64 = sbr.rel (0) target = $region21
    $region20: #{tpu_custom_call.1} parent=1 // pred_region
      %s66 = ssub.s32 32, 32
      %67 = vsyncadd [#allocation9], %s66
      %s69 = sshll.u32 [#allocation10], 4
      %s70 = int_to_ptr.vmem [resolvable:$true] %s69
      %72 = dma.hbm_to_vmem [thread:$0]  %s4, 32, %s70, [#allocation9]
    $region21: #{tpu_custom_call.1} parent=1 // pred_fallthru
      _
    // Predicated region
    $region22: #{tpu_custom_call.1} parent=1 // pred_check
      _
    $region23: #{tpu_custom_call.1} parent=1 // pred_check_branch
      %74 = sbr.rel (0) target = $region25
    $region24: #{tpu_custom_call.1} parent=1 // pred_region
      %s76 = ssub.s32 2048, 2048
      %77 = vsyncadd [#allocation12], %s76
      %s78 = sshll.u32 [#allocation11], 4
      %s79 = int_to_ptr.vmem [resolvable:$true] %s78
      %84 = dma.hbm_to_vmem [thread:$0]  %s5, 2048, %s79, [#allocation12], 64, 64, 4
    $region25: #{tpu_custom_call.1} parent=1 // pred_fallthru
      _
    // Predicated region
    $region26: #{tpu_custom_call.1} parent=1 // pred_check
      _
    $region27: #{tpu_custom_call.1} parent=1 // pred_check_branch
      %86 = sbr.rel (0) target = $region29
    $region28: #{tpu_custom_call.1} parent=1 // pred_region
      %s88 = ssub.s32 16, 16
      %89 = vsyncadd [#allocation12], %s88
      %s91 = sshll.u32 [#allocation13], 4
      %s92 = int_to_ptr.vmem [resolvable:$true] %s91
      %94 = dma.hbm_to_vmem [thread:$0]  %s6, 16, %s92, [#allocation12]
    $region29: #{tpu_custom_call.1} parent=1 // pred_fallthru
      _
    // Predicated region
    $region30: #{tpu_custom_call.1} parent=1 // pred_check
      _
    $region31: #{tpu_custom_call.1} parent=1 // pred_check_branch
      %96 = sbr.rel (0) target = $region33
    $region32: #{tpu_custom_call.1} parent=1 // pred_region
      %97 = dma.done [#allocation3], 3072
    $region33: #{tpu_custom_call.1} parent=1 // pred_fallthru
      _
    // Predicated region
    $region34: #{tpu_custom_call.1} parent=1 // pred_check
      _
    $region35: #{tpu_custom_call.1} parent=1 // pred_check_branch
      %99 = sbr.rel (0) target = $region37
    $region36: #{tpu_custom_call.1} parent=1 // pred_region
      %100 = dma.done [#allocation6], 49152
    $region37: #{tpu_custom_call.1} parent=1 // pred_fallthru
      _
    // Predicated region
    $region38: #{tpu_custom_call.1} parent=1 // pred_check
      _
    $region39: #{tpu_custom_call.1} parent=1 // pred_check_branch
      %102 = sbr.rel (0) target = $region41
    $region40: #{tpu_custom_call.1} parent=1 // pred_region
      %103 = dma.done [#allocation6], 32
    $region41: #{tpu_custom_call.1} parent=1 // pred_fallthru
      _
    // Predicated region
    $region42: #{tpu_custom_call.1} parent=1 // pred_check
      _
    $region43: #{tpu_custom_call.1} parent=1 // pred_check_branch
      %105 = sbr.rel (0) target = $region45
    $region44: #{tpu_custom_call.1} parent=1 // pred_region
      %106 = dma.done [#allocation9], 4096
    $region45: #{tpu_custom_call.1} parent=1 // pred_fallthru
      _
    // Predicated region
    $region46: #{tpu_custom_call.1} parent=1 // pred_check
      _
    $region47: #{tpu_custom_call.1} parent=1 // pred_check_branch
      %108 = sbr.rel (0) target = $region49
    $region48: #{tpu_custom_call.1} parent=1 // pred_region
      %109 = dma.done [#allocation9], 32
    $region49: #{tpu_custom_call.1} parent=1 // pred_fallthru
      _
    // Predicated region
    $region50: #{tpu_custom_call.1} parent=1 // pred_check
      _
    $region51: #{tpu_custom_call.1} parent=1 // pred_check_branch
      %111 = sbr.rel (0) target = $region53
    $region52: #{tpu_custom_call.1} parent=1 // pred_region
      %112 = dma.done [#allocation12], 2048
    $region53: #{tpu_custom_call.1} parent=1 // pred_fallthru
      _
    // Predicated region
    $region54: #{tpu_custom_call.1} parent=1 // pred_check
      _
    $region55: #{tpu_custom_call.1} parent=1 // pred_check_branch
      %114 = sbr.rel (0) target = $region57
    $region56: #{tpu_custom_call.1} parent=1 // pred_region
      %115 = dma.done [#allocation12], 16
    $region57: #{tpu_custom_call.1} parent=1 // pred_fallthru
      _
    %v117 = vld [vmem:[#allocation2] sm:$0xff]
    %v118 = vld [vmem:[#allocation2 + $0x8] sm:$0xff]
    %v119 = vld [vmem:[#allocation2 + $0x10] sm:$0xff]
    %v120 = vld [vmem:[#allocation2 + $0x18] sm:$0xff]
    %v121 = vld [vmem:[#allocation2 + $0x20] sm:$0xff]
    %v122 = vld [vmem:[#allocation2 + $0x28] sm:$0xff]
    %v123 = vld [vmem:[#allocation2 + $0x30] sm:$0xff]
    %v124 = vld [vmem:[#allocation2 + $0x38] sm:$0xff]
    %v125 = vld [vmem:[#allocation2 + $0x40] sm:$0xff]
    %v126 = vld [vmem:[#allocation2 + $0x48] sm:$0xff]
    %v127 = vld [vmem:[#allocation2 + $0x50] sm:$0xff]
    %v128 = vld [vmem:[#allocation2 + $0x58] sm:$0xff]
    %v129 = vld [vmem:[#allocation2 + $0x60] sm:$0xff]
    %v130 = vld [vmem:[#allocation2 + $0x68] sm:$0xff]
    %v131 = vld [vmem:[#allocation2 + $0x70] sm:$0xff]
    %v132 = vld [vmem:[#allocation2 + $0x78] sm:$0xff]
    %v133 = vld [vmem:[#allocation2 + $0x80] sm:$0xff]
    %v134 = vld [vmem:[#allocation2 + $0x88] sm:$0xff]
    %v135 = vld [vmem:[#allocation2 + $0x90] sm:$0xff]
    %v136 = vld [vmem:[#allocation2 + $0x98] sm:$0xff]
    %v137 = vld [vmem:[#allocation2 + $0xa0] sm:$0xff]
    %v138 = vld [vmem:[#allocation2 + $0xa8] sm:$0xff]
    %v139 = vld [vmem:[#allocation2 + $0xb0] sm:$0xff]
    %v140 = vld [vmem:[#allocation2 + $0xb8] sm:$0xff]
    %v165 = vcombine.low %v117, %v123
    %v166 = vcombine.high %v117, %v123
    %v167 = vcombine.low %v129, %v135
    %v168 = vcombine.high %v129, %v135
    %v170 = vunpack.c.l.s4 1983009808
    %v171 = vunpack.c.0.s8 %v170
    %v172 = vlaneseq
    %v173 = vshrl.u32 %v172, 7
    %v174 = vsub.s32 %v171, %v173
    %v175 = vrot.slane %v165, %v174
    %v177 = vunpack.c.l.s4 1983009808
    %v178 = vunpack.c.0.s8 %v177
    %v179 = vlaneseq
    %v180 = vshrl.u32 %v179, 7
    %v181 = vsub.s32 %v178, %v180
    %v182 = vrot.slane %v166, %v181
    %v184 = vunpack.c.l.s4 1983009808
    %v185 = vunpack.c.0.s8 %v184
    %v186 = vlaneseq
    %v187 = vshrl.u32 %v186, 7
    %v188 = vsub.s32 %v185, %v187
    %v189 = vrot.slane %v167, %v188
    %v191 = vunpack.c.l.s4 1983009808
    %v192 = vunpack.c.0.s8 %v191
    %v193 = vlaneseq
    %v194 = vshrl.u32 %v193, 7
    %v195 = vsub.s32 %v192, %v194
    %v196 = vrot.slane %v168, %v195
    %v197 = vcombine.low %v175, %v189
    %v198 = vcombine.high %v175, %v189
    %v199 = vcombine.low %v182, %v196
    %v200 = vcombine.high %v182, %v196
    %v201 = vcombine.low %v118, %v124
    %v202 = vcombine.high %v118, %v124
    %v203 = vcombine.low %v130, %v136
    %v204 = vcombine.high %v130, %v136
    %v206 = vunpack.c.l.s4 1983009808
    %v207 = vunpack.c.0.s8 %v206
    %v208 = vlaneseq
    %v209 = vshrl.u32 %v208, 7
    %v210 = vsub.s32 %v207, %v209
    %v211 = vrot.slane %v201, %v210
    %v213 = vunpack.c.l.s4 1983009808
    %v214 = vunpack.c.0.s8 %v213
    %v215 = vlaneseq
    %v216 = vshrl.u32 %v215, 7
    %v217 = vsub.s32 %v214, %v216
    %v218 = vrot.slane %v202, %v217
    %v220 = vunpack.c.l.s4 1983009808
    %v221 = vunpack.c.0.s8 %v220
    %v222 = vlaneseq
    %v223 = vshrl.u32 %v222, 7
    %v224 = vsub.s32 %v221, %v223
    %v225 = vrot.slane %v203, %v224
    %v227 = vunpack.c.l.s4 1983009808
    %v228 = vunpack.c.0.s8 %v227
    %v229 = vlaneseq
    %v230 = vshrl.u32 %v229, 7
    %v231 = vsub.s32 %v228, %v230
    %v232 = vrot.slane %v204, %v231
    %v233 = vcombine.low %v211, %v225
    %v234 = vcombine.high %v211, %v225
    %v235 = vcombine.low %v218, %v232
    %v236 = vcombine.high %v218, %v232
    %v237 = vcombine.low %v119, %v125
    %v238 = vcombine.high %v119, %v125
    %v239 = vcombine.low %v131, %v137
    %v240 = vcombine.high %v131, %v137
    %v242 = vunpack.c.l.s4 1983009808
    %v243 = vunpack.c.0.s8 %v242
    %v244 = vlaneseq
    %v245 = vshrl.u32 %v244, 7
    %v246 = vsub.s32 %v243, %v245
    %v247 = vrot.slane %v237, %v246
    %v249 = vunpack.c.l.s4 1983009808
    %v250 = vunpack.c.0.s8 %v249
    %v251 = vlaneseq
    %v252 = vshrl.u32 %v251, 7
    %v253 = vsub.s32 %v250, %v252
    %v254 = vrot.slane %v238, %v253
    %v256 = vunpack.c.l.s4 1983009808
    %v257 = vunpack.c.0.s8 %v256
    %v258 = vlaneseq
    %v259 = vshrl.u32 %v258, 7
    %v260 = vsub.s32 %v257, %v259
    %v261 = vrot.slane %v239, %v260
    %v263 = vunpack.c.l.s4 1983009808
    %v264 = vunpack.c.0.s8 %v263
    %v265 = vlaneseq
    %v266 = vshrl.u32 %v265, 7
    %v267 = vsub.s32 %v264, %v266
    %v268 = vrot.slane %v240, %v267
    %v269 = vcombine.low %v247, %v261
    %v270 = vcombine.high %v247, %v261
    %v271 = vcombine.low %v254, %v268
    %v272 = vcombine.high %v254, %v268
    %v273 = vcombine.low %v120, %v126
    %v274 = vcombine.high %v120, %v126
    %v275 = vcombine.low %v132, %v138
    %v276 = vcombine.high %v132, %v138
    %v278 = vunpack.c.l.s4 1983009808
    %v279 = vunpack.c.0.s8 %v278
    %v280 = vlaneseq
    %v281 = vshrl.u32 %v280, 7
    %v282 = vsub.s32 %v279, %v281
    %v283 = vrot.slane %v273, %v282
    %v285 = vunpack.c.l.s4 1983009808
    %v286 = vunpack.c.0.s8 %v285
    %v287 = vlaneseq
    %v288 = vshrl.u32 %v287, 7
    %v289 = vsub.s32 %v286, %v288
    %v290 = vrot.slane %v274, %v289
    %v292 = vunpack.c.l.s4 1983009808
    %v293 = vunpack.c.0.s8 %v292
    %v294 = vlaneseq
    %v295 = vshrl.u32 %v294, 7
    %v296 = vsub.s32 %v293, %v295
    %v297 = vrot.slane %v275, %v296
    %v299 = vunpack.c.l.s4 1983009808
    %v300 = vunpack.c.0.s8 %v299
    %v301 = vlaneseq
    %v302 = vshrl.u32 %v301, 7
    %v303 = vsub.s32 %v300, %v302
    %v304 = vrot.slane %v276, %v303
    %v305 = vcombine.low %v283, %v297
    %v306 = vcombine.high %v283, %v297
    %v307 = vcombine.low %v290, %v304
    %v308 = vcombine.high %v290, %v304
    %v309 = vcombine.low %v121, %v127
    %v310 = vcombine.high %v121, %v127
    %v311 = vcombine.low %v133, %v139
    %v312 = vcombine.high %v133, %v139
    %v314 = vunpack.c.l.s4 1983009808
    %v315 = vunpack.c.0.s8 %v314
    %v316 = vlaneseq
    %v317 = vshrl.u32 %v316, 7
    %v318 = vsub.s32 %v315, %v317
    %v319 = vrot.slane %v309, %v318
    %v321 = vunpack.c.l.s4 1983009808
    %v322 = vunpack.c.0.s8 %v321
    %v323 = vlaneseq
    %v324 = vshrl.u32 %v323, 7
    %v325 = vsub.s32 %v322, %v324
    %v326 = vrot.slane %v310, %v325
    %v328 = vunpack.c.l.s4 1983009808
    %v329 = vunpack.c.0.s8 %v328
    %v330 = vlaneseq
    %v331 = vshrl.u32 %v330, 7
    %v332 = vsub.s32 %v329, %v331
    %v333 = vrot.slane %v311, %v332
    %v335 = vunpack.c.l.s4 1983009808
    %v336 = vunpack.c.0.s8 %v335
    %v337 = vlaneseq
    %v338 = vshrl.u32 %v337, 7
    %v339 = vsub.s32 %v336, %v338
    %v340 = vrot.slane %v312, %v339
    %v341 = vcombine.low %v319, %v333
    %v342 = vcombine.high %v319, %v333
    %v343 = vcombine.low %v326, %v340
    %v344 = vcombine.high %v326, %v340
    %v345 = vcombine.low %v122, %v128
    %v346 = vcombine.high %v122, %v128
    %v347 = vcombine.low %v134, %v140
    %v348 = vcombine.high %v134, %v140
    %v350 = vunpack.c.l.s4 1983009808
    %v351 = vunpack.c.0.s8 %v350
    %v352 = vlaneseq
    %v353 = vshrl.u32 %v352, 7
    %v354 = vsub.s32 %v351, %v353
    %v355 = vrot.slane %v345, %v354
    %v357 = vunpack.c.l.s4 1983009808
    %v358 = vunpack.c.0.s8 %v357
    %v359 = vlaneseq
    %v360 = vshrl.u32 %v359, 7
    %v361 = vsub.s32 %v358, %v360
    %v362 = vrot.slane %v346, %v361
    %v364 = vunpack.c.l.s4 1983009808
    %v365 = vunpack.c.0.s8 %v364
    %v366 = vlaneseq
    %v367 = vshrl.u32 %v366, 7
    %v368 = vsub.s32 %v365, %v367
    %v369 = vrot.slane %v347, %v368
    %v371 = vunpack.c.l.s4 1983009808
    %v372 = vunpack.c.0.s8 %v371
    %v373 = vlaneseq
    %v374 = vshrl.u32 %v373, 7
    %v375 = vsub.s32 %v372, %v374
    %v376 = vrot.slane %v348, %v375
    %v377 = vcombine.low %v355, %v369
    %v378 = vcombine.high %v355, %v369
    %v379 = vcombine.low %v362, %v376
    %v380 = vcombine.high %v362, %v376
    %v405 = vpack.c.bf16 %v197, %v197
    %v406 = vpack.c.bf16 %v198, %v198
    %v407 = vpack.c.bf16 %v199, %v199
    %v408 = vpack.c.bf16 %v200, %v200
    %v409 = vpack.c.bf16 %v233, %v233
    %v410 = vpack.c.bf16 %v234, %v234
    %v411 = vpack.c.bf16 %v235, %v235
    %v412 = vpack.c.bf16 %v236, %v236
    %v413 = vpack.c.bf16 %v269, %v269
    %v414 = vpack.c.bf16 %v270, %v270
    %v415 = vpack.c.bf16 %v271, %v271
    %v416 = vpack.c.bf16 %v272, %v272
    %v417 = vpack.c.bf16 %v305, %v305
    %v418 = vpack.c.bf16 %v306, %v306
    %v419 = vpack.c.bf16 %v307, %v307
    %v420 = vpack.c.bf16 %v308, %v308
    %v421 = vpack.c.bf16 %v341, %v341
    %v422 = vpack.c.bf16 %v342, %v342
    %v423 = vpack.c.bf16 %v343, %v343
    %v424 = vpack.c.bf16 %v344, %v344
    %v425 = vpack.c.bf16 %v377, %v377
    %v426 = vpack.c.bf16 %v378, %v378
    %v427 = vpack.c.bf16 %v379, %v379
    %v428 = vpack.c.bf16 %v380, %v380
    %v429 = vld [vmem:[#allocation5] sm:$0xff]
    %v430 = vld [vmem:[#allocation5 + $0x8] sm:$0xff]
    %v431 = vld [vmem:[#allocation5 + $0x10] sm:$0xff]
    %v432 = vld [vmem:[#allocation5 + $0x18] sm:$0xff]
    %v433 = vld [vmem:[#allocation5 + $0x20] sm:$0xff]
    %v434 = vld [vmem:[#allocation5 + $0x28] sm:$0xff]
    %v435 = vld [vmem:[#allocation5 + $0x30] sm:$0xff]
    %v436 = vld [vmem:[#allocation5 + $0x38] sm:$0xff]
    %v437 = vld [vmem:[#allocation5 + $0x40] sm:$0xff]
    %v438 = vld [vmem:[#allocation5 + $0x48] sm:$0xff]
    %v439 = vld [vmem:[#allocation5 + $0x50] sm:$0xff]
    %v440 = vld [vmem:[#allocation5 + $0x58] sm:$0xff]
    %v441 = vld [vmem:[#allocation5 + $0x60] sm:$0xff]
    %v442 = vld [vmem:[#allocation5 + $0x68] sm:$0xff]
    %v443 = vld [vmem:[#allocation5 + $0x70] sm:$0xff]
    %v444 = vld [vmem:[#allocation5 + $0x78] sm:$0xff]
    %v445 = vld [vmem:[#allocation5 + $0x80] sm:$0xff]
    %v446 = vld [vmem:[#allocation5 + $0x88] sm:$0xff]
    %v447 = vld [vmem:[#allocation5 + $0x90] sm:$0xff]
    %v448 = vld [vmem:[#allocation5 + $0x98] sm:$0xff]
    %v449 = vld [vmem:[#allocation5 + $0xa0] sm:$0xff]
    %v450 = vld [vmem:[#allocation5 + $0xa8] sm:$0xff]
    %v451 = vld [vmem:[#allocation5 + $0xb0] sm:$0xff]
    %v452 = vld [vmem:[#allocation5 + $0xb8] sm:$0xff]
    %v453 = vld [vmem:[#allocation5 + $0xc0] sm:$0xff]
    %v454 = vld [vmem:[#allocation5 + $0xc8] sm:$0xff]
    %v455 = vld [vmem:[#allocation5 + $0xd0] sm:$0xff]
    %v456 = vld [vmem:[#allocation5 + $0xd8] sm:$0xff]
    %v457 = vld [vmem:[#allocation5 + $0xe0] sm:$0xff]
    %v458 = vld [vmem:[#allocation5 + $0xe8] sm:$0xff]
    %v459 = vld [vmem:[#allocation5 + $0xf0] sm:$0xff]
    %v460 = vld [vmem:[#allocation5 + $0xf8] sm:$0xff]
    %v461 = vld [vmem:[#allocation5 + $0x100] sm:$0xff]
    %v462 = vld [vmem:[#allocation5 + $0x108] sm:$0xff]
    %v463 = vld [vmem:[#allocation5 + $0x110] sm:$0xff]
    %v464 = vld [vmem:[#allocation5 + $0x118] sm:$0xff]
    %v465 = vld [vmem:[#allocation5 + $0x120] sm:$0xff]
    %v466 = vld [vmem:[#allocation5 + $0x128] sm:$0xff]
    %v467 = vld [vmem:[#allocation5 + $0x130] sm:$0xff]
    %v468 = vld [vmem:[#allocation5 + $0x138] sm:$0xff]
    %v469 = vld [vmem:[#allocation5 + $0x140] sm:$0xff]
    %v470 = vld [vmem:[#allocation5 + $0x148] sm:$0xff]
    %v471 = vld [vmem:[#allocation5 + $0x150] sm:$0xff]
    %v472 = vld [vmem:[#allocation5 + $0x158] sm:$0xff]
    %v473 = vld [vmem:[#allocation5 + $0x160] sm:$0xff]
    %v474 = vld [vmem:[#allocation5 + $0x168] sm:$0xff]
    %v475 = vld [vmem:[#allocation5 + $0x170] sm:$0xff]
    %v476 = vld [vmem:[#allocation5 + $0x178] sm:$0xff]
    %v477 = vld [vmem:[#allocation5 + $0x180] sm:$0xff]
    %v478 = vld [vmem:[#allocation5 + $0x188] sm:$0xff]
    %v479 = vld [vmem:[#allocation5 + $0x190] sm:$0xff]
    %v480 = vld [vmem:[#allocation5 + $0x198] sm:$0xff]
    %v481 = vld [vmem:[#allocation5 + $0x1a0] sm:$0xff]
    %v482 = vld [vmem:[#allocation5 + $0x1a8] sm:$0xff]
    %v483 = vld [vmem:[#allocation5 + $0x1b0] sm:$0xff]
    %v484 = vld [vmem:[#allocation5 + $0x1b8] sm:$0xff]
    %v485 = vld [vmem:[#allocation5 + $0x1c0] sm:$0xff]
    %v486 = vld [vmem:[#allocation5 + $0x1c8] sm:$0xff]
    %v487 = vld [vmem:[#allocation5 + $0x1d0] sm:$0xff]
    %v488 = vld [vmem:[#allocation5 + $0x1d8] sm:$0xff]
    %v489 = vld [vmem:[#allocation5 + $0x1e0] sm:$0xff]
    %v490 = vld [vmem:[#allocation5 + $0x1e8] sm:$0xff]
    %v491 = vld [vmem:[#allocation5 + $0x1f0] sm:$0xff]
    %v492 = vld [vmem:[#allocation5 + $0x1f8] sm:$0xff]
    %v493 = vld [vmem:[#allocation5 + $0x200] sm:$0xff]
    %v494 = vld [vmem:[#allocation5 + $0x208] sm:$0xff]
    %v495 = vld [vmem:[#allocation5 + $0x210] sm:$0xff]
    %v496 = vld [vmem:[#allocation5 + $0x218] sm:$0xff]
    %v497 = vld [vmem:[#allocation5 + $0x220] sm:$0xff]
    %v498 = vld [vmem:[#allocation5 + $0x228] sm:$0xff]
    %v499 = vld [vmem:[#allocation5 + $0x230] sm:$0xff]
    %v500 = vld [vmem:[#allocation5 + $0x238] sm:$0xff]
    %v501 = vld [vmem:[#allocation5 + $0x240] sm:$0xff]
    %v502 = vld [vmem:[#allocation5 + $0x248] sm:$0xff]
    %v503 = vld [vmem:[#allocation5 + $0x250] sm:$0xff]
    %v504 = vld [vmem:[#allocation5 + $0x258] sm:$0xff]
    %v505 = vld [vmem:[#allocation5 + $0x260] sm:$0xff]
    %v506 = vld [vmem:[#allocation5 + $0x268] sm:$0xff]
    %v507 = vld [vmem:[#allocation5 + $0x270] sm:$0xff]
    %v508 = vld [vmem:[#allocation5 + $0x278] sm:$0xff]
    %v509 = vld [vmem:[#allocation5 + $0x280] sm:$0xff]
    %v510 = vld [vmem:[#allocation5 + $0x288] sm:$0xff]
    %v511 = vld [vmem:[#allocation5 + $0x290] sm:$0xff]
    %v512 = vld [vmem:[#allocation5 + $0x298] sm:$0xff]
    %v513 = vld [vmem:[#allocation5 + $0x2a0] sm:$0xff]
    %v514 = vld [vmem:[#allocation5 + $0x2a8] sm:$0xff]
    %v515 = vld [vmem:[#allocation5 + $0x2b0] sm:$0xff]
    %v516 = vld [vmem:[#allocation5 + $0x2b8] sm:$0xff]
    %v517 = vld [vmem:[#allocation5 + $0x2c0] sm:$0xff]
    %v518 = vld [vmem:[#allocation5 + $0x2c8] sm:$0xff]
    %v519 = vld [vmem:[#allocation5 + $0x2d0] sm:$0xff]
    %v520 = vld [vmem:[#allocation5 + $0x2d8] sm:$0xff]
    %v521 = vld [vmem:[#allocation5 + $0x2e0] sm:$0xff]
    %v522 = vld [vmem:[#allocation5 + $0x2e8] sm:$0xff]
    %v523 = vld [vmem:[#allocation5 + $0x2f0] sm:$0xff]
    %v524 = vld [vmem:[#allocation5 + $0x2f8] sm:$0xff]
    %v525 = vld [vmem:[#allocation5 + $0x300] sm:$0xff]
    %v526 = vld [vmem:[#allocation5 + $0x308] sm:$0xff]
    %v527 = vld [vmem:[#allocation5 + $0x310] sm:$0xff]
    %v528 = vld [vmem:[#allocation5 + $0x318] sm:$0xff]
    %v529 = vld [vmem:[#allocation5 + $0x320] sm:$0xff]
    %v530 = vld [vmem:[#allocation5 + $0x328] sm:$0xff]
    %v531 = vld [vmem:[#allocation5 + $0x330] sm:$0xff]
    %v532 = vld [vmem:[#allocation5 + $0x338] sm:$0xff]
    %v533 = vld [vmem:[#allocation5 + $0x340] sm:$0xff]
    %v534 = vld [vmem:[#allocation5 + $0x348] sm:$0xff]
    %v535 = vld [vmem:[#allocation5 + $0x350] sm:$0xff]
    %v536 = vld [vmem:[#allocation5 + $0x358] sm:$0xff]
    %v537 = vld [vmem:[#allocation5 + $0x360] sm:$0xff]
    %v538 = vld [vmem:[#allocation5 + $0x368] sm:$0xff]
    %v539 = vld [vmem:[#allocation5 + $0x370] sm:$0xff]
    %v540 = vld [vmem:[#allocation5 + $0x378] sm:$0xff]
    %v541 = vld [vmem:[#allocation5 + $0x380] sm:$0xff]
    %v542 = vld [vmem:[#allocation5 + $0x388] sm:$0xff]
    %v543 = vld [vmem:[#allocation5 + $0x390] sm:$0xff]
    %v544 = vld [vmem:[#allocation5 + $0x398] sm:$0xff]
    %v545 = vld [vmem:[#allocation5 + $0x3a0] sm:$0xff]
    %v546 = vld [vmem:[#allocation5 + $0x3a8] sm:$0xff]
    %v547 = vld [vmem:[#allocation5 + $0x3b0] sm:$0xff]
    %v548 = vld [vmem:[#allocation5 + $0x3b8] sm:$0xff]
    %v549 = vld [vmem:[#allocation5 + $0x3c0] sm:$0xff]
    %v550 = vld [vmem:[#allocation5 + $0x3c8] sm:$0xff]
    %v551 = vld [vmem:[#allocation5 + $0x3d0] sm:$0xff]
    %v552 = vld [vmem:[#allocation5 + $0x3d8] sm:$0xff]
    %v553 = vld [vmem:[#allocation5 + $0x3e0] sm:$0xff]
    %v554 = vld [vmem:[#allocation5 + $0x3e8] sm:$0xff]
    %v555 = vld [vmem:[#allocation5 + $0x3f0] sm:$0xff]
    %v556 = vld [vmem:[#allocation5 + $0x3f8] sm:$0xff]
    %v557 = vld [vmem:[#allocation5 + $0x400] sm:$0xff]
    %v558 = vld [vmem:[#allocation5 + $0x408] sm:$0xff]
    %v559 = vld [vmem:[#allocation5 + $0x410] sm:$0xff]
    %v560 = vld [vmem:[#allocation5 + $0x418] sm:$0xff]
    %v561 = vld [vmem:[#allocation5 + $0x420] sm:$0xff]
    %v562 = vld [vmem:[#allocation5 + $0x428] sm:$0xff]
    %v563 = vld [vmem:[#allocation5 + $0x430] sm:$0xff]
    %v564 = vld [vmem:[#allocation5 + $0x438] sm:$0xff]
    %v565 = vld [vmem:[#allocation5 + $0x440] sm:$0xff]
    %v566 = vld [vmem:[#allocation5 + $0x448] sm:$0xff]
    %v567 = vld [vmem:[#allocation5 + $0x450] sm:$0xff]
    %v568 = vld [vmem:[#allocation5 + $0x458] sm:$0xff]
    %v569 = vld [vmem:[#allocation5 + $0x460] sm:$0xff]
    %v570 = vld [vmem:[#allocation5 + $0x468] sm:$0xff]
    %v571 = vld [vmem:[#allocation5 + $0x470] sm:$0xff]
    %v572 = vld [vmem:[#allocation5 + $0x478] sm:$0xff]
    %v573 = vld [vmem:[#allocation5 + $0x480] sm:$0xff]
    %v574 = vld [vmem:[#allocation5 + $0x488] sm:$0xff]
    %v575 = vld [vmem:[#allocation5 + $0x490] sm:$0xff]
    %v576 = vld [vmem:[#allocation5 + $0x498] sm:$0xff]
    %v577 = vld [vmem:[#allocation5 + $0x4a0] sm:$0xff]
    %v578 = vld [vmem:[#allocation5 + $0x4a8] sm:$0xff]
    %v579 = vld [vmem:[#allocation5 + $0x4b0] sm:$0xff]
    %v580 = vld [vmem:[#allocation5 + $0x4b8] sm:$0xff]
    %v581 = vld [vmem:[#allocation5 + $0x4c0] sm:$0xff]
    %v582 = vld [vmem:[#allocation5 + $0x4c8] sm:$0xff]
    %v583 = vld [vmem:[#allocation5 + $0x4d0] sm:$0xff]
    %v584 = vld [vmem:[#allocation5 + $0x4d8] sm:$0xff]
    %v585 = vld [vmem:[#allocation5 + $0x4e0] sm:$0xff]
    %v586 = vld [vmem:[#allocation5 + $0x4e8] sm:$0xff]
    %v587 = vld [vmem:[#allocation5 + $0x4f0] sm:$0xff]
    %v588 = vld [vmem:[#allocation5 + $0x4f8] sm:$0xff]
    %v589 = vld [vmem:[#allocation5 + $0x500] sm:$0xff]
    %v590 = vld [vmem:[#allocation5 + $0x508] sm:$0xff]
    %v591 = vld [vmem:[#allocation5 + $0x510] sm:$0xff]
    %v592 = vld [vmem:[#allocation5 + $0x518] sm:$0xff]
    %v593 = vld [vmem:[#allocation5 + $0x520] sm:$0xff]
    %v594 = vld [vmem:[#allocation5 + $0x528] sm:$0xff]
    %v595 = vld [vmem:[#allocation5 + $0x530] sm:$0xff]
    %v596 = vld [vmem:[#allocation5 + $0x538] sm:$0xff]
    %v597 = vld [vmem:[#allocation5 + $0x540] sm:$0xff]
    %v598 = vld [vmem:[#allocation5 + $0x548] sm:$0xff]
    %v599 = vld [vmem:[#allocation5 + $0x550] sm:$0xff]
    %v600 = vld [vmem:[#allocation5 + $0x558] sm:$0xff]
    %v601 = vld [vmem:[#allocation5 + $0x560] sm:$0xff]
    %v602 = vld [vmem:[#allocation5 + $0x568] sm:$0xff]
    %v603 = vld [vmem:[#allocation5 + $0x570] sm:$0xff]
    %v604 = vld [vmem:[#allocation5 + $0x578] sm:$0xff]
    %v605 = vld [vmem:[#allocation5 + $0x580] sm:$0xff]
    %v606 = vld [vmem:[#allocation5 + $0x588] sm:$0xff]
    %v607 = vld [vmem:[#allocation5 + $0x590] sm:$0xff]
    %v608 = vld [vmem:[#allocation5 + $0x598] sm:$0xff]
    %v609 = vld [vmem:[#allocation5 + $0x5a0] sm:$0xff]
    %v610 = vld [vmem:[#allocation5 + $0x5a8] sm:$0xff]
    %v611 = vld [vmem:[#allocation5 + $0x5b0] sm:$0xff]
    %v612 = vld [vmem:[#allocation5 + $0x5b8] sm:$0xff]
    %v613 = vld [vmem:[#allocation5 + $0x5c0] sm:$0xff]
    %v614 = vld [vmem:[#allocation5 + $0x5c8] sm:$0xff]
    %v615 = vld [vmem:[#allocation5 + $0x5d0] sm:$0xff]
    %v616 = vld [vmem:[#allocation5 + $0x5d8] sm:$0xff]
    %v617 = vld [vmem:[#allocation5 + $0x5e0] sm:$0xff]
    %v618 = vld [vmem:[#allocation5 + $0x5e8] sm:$0xff]
    %v619 = vld [vmem:[#allocation5 + $0x5f0] sm:$0xff]
    %v620 = vld [vmem:[#allocation5 + $0x5f8] sm:$0xff]
    %v621 = vld [vmem:[#allocation5 + $0x600] sm:$0xff]
    %v622 = vld [vmem:[#allocation5 + $0x608] sm:$0xff]
    %v623 = vld [vmem:[#allocation5 + $0x610] sm:$0xff]
    %v624 = vld [vmem:[#allocation5 + $0x618] sm:$0xff]
    %v625 = vld [vmem:[#allocation5 + $0x620] sm:$0xff]
    %v626 = vld [vmem:[#allocation5 + $0x628] sm:$0xff]
    %v627 = vld [vmem:[#allocation5 + $0x630] sm:$0xff]
    %v628 = vld [vmem:[#allocation5 + $0x638] sm:$0xff]
    %v629 = vld [vmem:[#allocation5 + $0x640] sm:$0xff]
    %v630 = vld [vmem:[#allocation5 + $0x648] sm:$0xff]
    %v631 = vld [vmem:[#allocation5 + $0x650] sm:$0xff]
    %v632 = vld [vmem:[#allocation5 + $0x658] sm:$0xff]
    %v633 = vld [vmem:[#allocation5 + $0x660] sm:$0xff]
    %v634 = vld [vmem:[#allocation5 + $0x668] sm:$0xff]
    %v635 = vld [vmem:[#allocation5 + $0x670] sm:$0xff]
    %v636 = vld [vmem:[#allocation5 + $0x678] sm:$0xff]
    %v637 = vld [vmem:[#allocation5 + $0x680] sm:$0xff]
    %v638 = vld [vmem:[#allocation5 + $0x688] sm:$0xff]
    %v639 = vld [vmem:[#allocation5 + $0x690] sm:$0xff]
    %v640 = vld [vmem:[#allocation5 + $0x698] sm:$0xff]
    %v641 = vld [vmem:[#allocation5 + $0x6a0] sm:$0xff]
    %v642 = vld [vmem:[#allocation5 + $0x6a8] sm:$0xff]
    %v643 = vld [vmem:[#allocation5 + $0x6b0] sm:$0xff]
    %v644 = vld [vmem:[#allocation5 + $0x6b8] sm:$0xff]
    %v645 = vld [vmem:[#allocation5 + $0x6c0] sm:$0xff]
    %v646 = vld [vmem:[#allocation5 + $0x6c8] sm:$0xff]
    %v647 = vld [vmem:[#allocation5 + $0x6d0] sm:$0xff]
    %v648 = vld [vmem:[#allocation5 + $0x6d8] sm:$0xff]
    %v649 = vld [vmem:[#allocation5 + $0x6e0] sm:$0xff]
    %v650 = vld [vmem:[#allocation5 + $0x6e8] sm:$0xff]
    %v651 = vld [vmem:[#allocation5 + $0x6f0] sm:$0xff]
    %v652 = vld [vmem:[#allocation5 + $0x6f8] sm:$0xff]
    %v653 = vld [vmem:[#allocation5 + $0x700] sm:$0xff]
    %v654 = vld [vmem:[#allocation5 + $0x708] sm:$0xff]
    %v655 = vld [vmem:[#allocation5 + $0x710] sm:$0xff]
    %v656 = vld [vmem:[#allocation5 + $0x718] sm:$0xff]
    %v657 = vld [vmem:[#allocation5 + $0x720] sm:$0xff]
    %v658 = vld [vmem:[#allocation5 + $0x728] sm:$0xff]
    %v659 = vld [vmem:[#allocation5 + $0x730] sm:$0xff]
    %v660 = vld [vmem:[#allocation5 + $0x738] sm:$0xff]
    %v661 = vld [vmem:[#allocation5 + $0x740] sm:$0xff]
    %v662 = vld [vmem:[#allocation5 + $0x748] sm:$0xff]
    %v663 = vld [vmem:[#allocation5 + $0x750] sm:$0xff]
    %v664 = vld [vmem:[#allocation5 + $0x758] sm:$0xff]
    %v665 = vld [vmem:[#allocation5 + $0x760] sm:$0xff]
    %v666 = vld [vmem:[#allocation5 + $0x768] sm:$0xff]
    %v667 = vld [vmem:[#allocation5 + $0x770] sm:$0xff]
    %v668 = vld [vmem:[#allocation5 + $0x778] sm:$0xff]
    %v669 = vld [vmem:[#allocation5 + $0x780] sm:$0xff]
    %v670 = vld [vmem:[#allocation5 + $0x788] sm:$0xff]
    %v671 = vld [vmem:[#allocation5 + $0x790] sm:$0xff]
    %v672 = vld [vmem:[#allocation5 + $0x798] sm:$0xff]
    %v673 = vld [vmem:[#allocation5 + $0x7a0] sm:$0xff]
    %v674 = vld [vmem:[#allocation5 + $0x7a8] sm:$0xff]
    %v675 = vld [vmem:[#allocation5 + $0x7b0] sm:$0xff]
    %v676 = vld [vmem:[#allocation5 + $0x7b8] sm:$0xff]
    %v677 = vld [vmem:[#allocation5 + $0x7c0] sm:$0xff]
    %v678 = vld [vmem:[#allocation5 + $0x7c8] sm:$0xff]
    %v679 = vld [vmem:[#allocation5 + $0x7d0] sm:$0xff]
    %v680 = vld [vmem:[#allocation5 + $0x7d8] sm:$0xff]
    %v681 = vld [vmem:[#allocation5 + $0x7e0] sm:$0xff]
    %v682 = vld [vmem:[#allocation5 + $0x7e8] sm:$0xff]
    %v683 = vld [vmem:[#allocation5 + $0x7f0] sm:$0xff]
    %v684 = vld [vmem:[#allocation5 + $0x7f8] sm:$0xff]
    %v685 = vld [vmem:[#allocation5 + $0x800] sm:$0xff]
    %v686 = vld [vmem:[#allocation5 + $0x808] sm:$0xff]
    %v687 = vld [vmem:[#allocation5 + $0x810] sm:$0xff]
    %v688 = vld [vmem:[#allocation5 + $0x818] sm:$0xff]
    %v689 = vld [vmem:[#allocation5 + $0x820] sm:$0xff]
    %v690 = vld [vmem:[#allocation5 + $0x828] sm:$0xff]
    %v691 = vld [vmem:[#allocation5 + $0x830] sm:$0xff]
    %v692 = vld [vmem:[#allocation5 + $0x838] sm:$0xff]
    %v693 = vld [vmem:[#allocation5 + $0x840] sm:$0xff]
    %v694 = vld [vmem:[#allocation5 + $0x848] sm:$0xff]
    %v695 = vld [vmem:[#allocation5 + $0x850] sm:$0xff]
    %v696 = vld [vmem:[#allocation5 + $0x858] sm:$0xff]
    %v697 = vld [vmem:[#allocation5 + $0x860] sm:$0xff]
    %v698 = vld [vmem:[#allocation5 + $0x868] sm:$0xff]
    %v699 = vld [vmem:[#allocation5 + $0x870] sm:$0xff]
    %v700 = vld [vmem:[#allocation5 + $0x878] sm:$0xff]
    %v701 = vld [vmem:[#allocation5 + $0x880] sm:$0xff]
    %v702 = vld [vmem:[#allocation5 + $0x888] sm:$0xff]
    %v703 = vld [vmem:[#allocation5 + $0x890] sm:$0xff]
    %v704 = vld [vmem:[#allocation5 + $0x898] sm:$0xff]
    %v705 = vld [vmem:[#allocation5 + $0x8a0] sm:$0xff]
    %v706 = vld [vmem:[#allocation5 + $0x8a8] sm:$0xff]
    %v707 = vld [vmem:[#allocation5 + $0x8b0] sm:$0xff]
    %v708 = vld [vmem:[#allocation5 + $0x8b8] sm:$0xff]
    %v709 = vld [vmem:[#allocation5 + $0x8c0] sm:$0xff]
    %v710 = vld [vmem:[#allocation5 + $0x8c8] sm:$0xff]
    %v711 = vld [vmem:[#allocation5 + $0x8d0] sm:$0xff]
    %v712 = vld [vmem:[#allocation5 + $0x8d8] sm:$0xff]
    %v713 = vld [vmem:[#allocation5 + $0x8e0] sm:$0xff]
    %v714 = vld [vmem:[#allocation5 + $0x8e8] sm:$0xff]
    %v715 = vld [vmem:[#allocation5 + $0x8f0] sm:$0xff]
    %v716 = vld [vmem:[#allocation5 + $0x8f8] sm:$0xff]
    %v717 = vld [vmem:[#allocation5 + $0x900] sm:$0xff]
    %v718 = vld [vmem:[#allocation5 + $0x908] sm:$0xff]
    %v719 = vld [vmem:[#allocation5 + $0x910] sm:$0xff]
    %v720 = vld [vmem:[#allocation5 + $0x918] sm:$0xff]
    %v721 = vld [vmem:[#allocation5 + $0x920] sm:$0xff]
    %v722 = vld [vmem:[#allocation5 + $0x928] sm:$0xff]
    %v723 = vld [vmem:[#allocation5 + $0x930] sm:$0xff]
    %v724 = vld [vmem:[#allocation5 + $0x938] sm:$0xff]
    %v725 = vld [vmem:[#allocation5 + $0x940] sm:$0xff]
    %v726 = vld [vmem:[#allocation5 + $0x948] sm:$0xff]
    %v727 = vld [vmem:[#allocation5 + $0x950] sm:$0xff]
    %v728 = vld [vmem:[#allocation5 + $0x958] sm:$0xff]
    %v729 = vld [vmem:[#allocation5 + $0x960] sm:$0xff]
    %v730 = vld [vmem:[#allocation5 + $0x968] sm:$0xff]
    %v731 = vld [vmem:[#allocation5 + $0x970] sm:$0xff]
    %v732 = vld [vmem:[#allocation5 + $0x978] sm:$0xff]
    %v733 = vld [vmem:[#allocation5 + $0x980] sm:$0xff]
    %v734 = vld [vmem:[#allocation5 + $0x988] sm:$0xff]
    %v735 = vld [vmem:[#allocation5 + $0x990] sm:$0xff]
    %v736 = vld [vmem:[#allocation5 + $0x998] sm:$0xff]
    %v737 = vld [vmem:[#allocation5 + $0x9a0] sm:$0xff]
    %v738 = vld [vmem:[#allocation5 + $0x9a8] sm:$0xff]
    %v739 = vld [vmem:[#allocation5 + $0x9b0] sm:$0xff]
    %v740 = vld [vmem:[#allocation5 + $0x9b8] sm:$0xff]
    %v741 = vld [vmem:[#allocation5 + $0x9c0] sm:$0xff]
    %v742 = vld [vmem:[#allocation5 + $0x9c8] sm:$0xff]
    %v743 = vld [vmem:[#allocation5 + $0x9d0] sm:$0xff]
    %v744 = vld [vmem:[#allocation5 + $0x9d8] sm:$0xff]
    %v745 = vld [vmem:[#allocation5 + $0x9e0] sm:$0xff]
    %v746 = vld [vmem:[#allocation5 + $0x9e8] sm:$0xff]
    %v747 = vld [vmem:[#allocation5 + $0x9f0] sm:$0xff]
    %v748 = vld [vmem:[#allocation5 + $0x9f8] sm:$0xff]
    %v749 = vld [vmem:[#allocation5 + $0xa00] sm:$0xff]
    %v750 = vld [vmem:[#allocation5 + $0xa08] sm:$0xff]
    %v751 = vld [vmem:[#allocation5 + $0xa10] sm:$0xff]
    %v752 = vld [vmem:[#allocation5 + $0xa18] sm:$0xff]
    %v753 = vld [vmem:[#allocation5 + $0xa20] sm:$0xff]
    %v754 = vld [vmem:[#allocation5 + $0xa28] sm:$0xff]
    %v755 = vld [vmem:[#allocation5 + $0xa30] sm:$0xff]
    %v756 = vld [vmem:[#allocation5 + $0xa38] sm:$0xff]
    %v757 = vld [vmem:[#allocation5 + $0xa40] sm:$0xff]
    %v758 = vld [vmem:[#allocation5 + $0xa48] sm:$0xff]
    %v759 = vld [vmem:[#allocation5 + $0xa50] sm:$0xff]
    %v760 = vld [vmem:[#allocation5 + $0xa58] sm:$0xff]
    %v761 = vld [vmem:[#allocation5 + $0xa60] sm:$0xff]
    %v762 = vld [vmem:[#allocation5 + $0xa68] sm:$0xff]
    %v763 = vld [vmem:[#allocation5 + $0xa70] sm:$0xff]
    %v764 = vld [vmem:[#allocation5 + $0xa78] sm:$0xff]
    %v765 = vld [vmem:[#allocation5 + $0xa80] sm:$0xff]
    %v766 = vld [vmem:[#allocation5 + $0xa88] sm:$0xff]
    %v767 = vld [vmem:[#allocation5 + $0xa90] sm:$0xff]
    %v768 = vld [vmem:[#allocation5 + $0xa98] sm:$0xff]
    %v769 = vld [vmem:[#allocation5 + $0xaa0] sm:$0xff]
    %v770 = vld [vmem:[#allocation5 + $0xaa8] sm:$0xff]
    %v771 = vld [vmem:[#allocation5 + $0xab0] sm:$0xff]
    %v772 = vld [vmem:[#allocation5 + $0xab8] sm:$0xff]
    %v773 = vld [vmem:[#allocation5 + $0xac0] sm:$0xff]
    %v774 = vld [vmem:[#allocation5 + $0xac8] sm:$0xff]
    %v775 = vld [vmem:[#allocation5 + $0xad0] sm:$0xff]
    %v776 = vld [vmem:[#allocation5 + $0xad8] sm:$0xff]
    %v777 = vld [vmem:[#allocation5 + $0xae0] sm:$0xff]
    %v778 = vld [vmem:[#allocation5 + $0xae8] sm:$0xff]
    %v779 = vld [vmem:[#allocation5 + $0xaf0] sm:$0xff]
    %v780 = vld [vmem:[#allocation5 + $0xaf8] sm:$0xff]
    %v781 = vld [vmem:[#allocation5 + $0xb00] sm:$0xff]
    %v782 = vld [vmem:[#allocation5 + $0xb08] sm:$0xff]
    %v783 = vld [vmem:[#allocation5 + $0xb10] sm:$0xff]
    %v784 = vld [vmem:[#allocation5 + $0xb18] sm:$0xff]
    %v785 = vld [vmem:[#allocation5 + $0xb20] sm:$0xff]
    %v786 = vld [vmem:[#allocation5 + $0xb28] sm:$0xff]
    %v787 = vld [vmem:[#allocation5 + $0xb30] sm:$0xff]
    %v788 = vld [vmem:[#allocation5 + $0xb38] sm:$0xff]
    %v789 = vld [vmem:[#allocation5 + $0xb40] sm:$0xff]
    %v790 = vld [vmem:[#allocation5 + $0xb48] sm:$0xff]
    %v791 = vld [vmem:[#allocation5 + $0xb50] sm:$0xff]
    %v792 = vld [vmem:[#allocation5 + $0xb58] sm:$0xff]
    %v793 = vld [vmem:[#allocation5 + $0xb60] sm:$0xff]
    %v794 = vld [vmem:[#allocation5 + $0xb68] sm:$0xff]
    %v795 = vld [vmem:[#allocation5 + $0xb70] sm:$0xff]
    %v796 = vld [vmem:[#allocation5 + $0xb78] sm:$0xff]
    %v797 = vld [vmem:[#allocation5 + $0xb80] sm:$0xff]
    %v798 = vld [vmem:[#allocation5 + $0xb88] sm:$0xff]
    %v799 = vld [vmem:[#allocation5 + $0xb90] sm:$0xff]
    %v800 = vld [vmem:[#allocation5 + $0xb98] sm:$0xff]
    %v801 = vld [vmem:[#allocation5 + $0xba0] sm:$0xff]
    %v802 = vld [vmem:[#allocation5 + $0xba8] sm:$0xff]
    %v803 = vld [vmem:[#allocation5 + $0xbb0] sm:$0xff]
    %v804 = vld [vmem:[#allocation5 + $0xbb8] sm:$0xff]
    %v805 = vld [vmem:[#allocation5 + $0xbc0] sm:$0xff]
    %v806 = vld [vmem:[#allocation5 + $0xbc8] sm:$0xff]
    %v807 = vld [vmem:[#allocation5 + $0xbd0] sm:$0xff]
    %v808 = vld [vmem:[#allocation5 + $0xbd8] sm:$0xff]
    %v809 = vld [vmem:[#allocation5 + $0xbe0] sm:$0xff]
    %v810 = vld [vmem:[#allocation5 + $0xbe8] sm:$0xff]
    %v811 = vld [vmem:[#allocation5 + $0xbf0] sm:$0xff]
    %v812 = vld [vmem:[#allocation5 + $0xbf8] sm:$0xff]
    %v813 = vld [vmem:[#allocation7] sm:$0x3]
    %v815 = vlaneseq
    %v816 = vshrl.u32 %v815, 7
    %v817 = vsub.s32 0, %v816
    %v818 = vrot.slane %v813, %v817
    %v819 = vlaneseq
    %v820 = vshrl.u32 %v819, 7
    %v821 = vsub.s32 1, %v820
    %v822 = vrot.slane %v813, %v821
    %v1209 = vunpack.c.l.b16 %v429
    %v1210 = vunpack.c.h.b16 %v429
    %v1211 = vunpack.c.l.b16 %v430
    %v1212 = vunpack.c.h.b16 %v430
    %v1213 = vunpack.c.l.b16 %v431
    %v1214 = vunpack.c.h.b16 %v431
    %v1215 = vunpack.c.l.b16 %v432
    %v1216 = vunpack.c.h.b16 %v432
    %v1217 = vunpack.c.l.b16 %v433
    %v1218 = vunpack.c.h.b16 %v433
    %v1219 = vunpack.c.l.b16 %v434
    %v1220 = vunpack.c.h.b16 %v434
    %v1221 = vunpack.c.l.b16 %v435
    %v1222 = vunpack.c.h.b16 %v435
    %v1223 = vunpack.c.l.b16 %v436
    %v1224 = vunpack.c.h.b16 %v436
    %v1225 = vunpack.c.l.b16 %v437
    %v1226 = vunpack.c.h.b16 %v437
    %v1227 = vunpack.c.l.b16 %v438
    %v1228 = vunpack.c.h.b16 %v438
    %v1229 = vunpack.c.l.b16 %v439
    %v1230 = vunpack.c.h.b16 %v439
    %v1231 = vunpack.c.l.b16 %v440
    %v1232 = vunpack.c.h.b16 %v440
    %v1233 = vunpack.c.l.b16 %v441
    %v1234 = vunpack.c.h.b16 %v441
    %v1235 = vunpack.c.l.b16 %v442
    %v1236 = vunpack.c.h.b16 %v442
    %v1237 = vunpack.c.l.b16 %v443
    %v1238 = vunpack.c.h.b16 %v443
    %v1239 = vunpack.c.l.b16 %v444
    %v1240 = vunpack.c.h.b16 %v444
    %v1241 = vunpack.c.l.b16 %v445
    %v1242 = vunpack.c.h.b16 %v445
    %v1243 = vunpack.c.l.b16 %v446
    %v1244 = vunpack.c.h.b16 %v446
    %v1245 = vunpack.c.l.b16 %v447
    %v1246 = vunpack.c.h.b16 %v447
    %v1247 = vunpack.c.l.b16 %v448
    %v1248 = vunpack.c.h.b16 %v448
    %v1249 = vunpack.c.l.b16 %v449
    %v1250 = vunpack.c.h.b16 %v449
    %v1251 = vunpack.c.l.b16 %v450
    %v1252 = vunpack.c.h.b16 %v450
    %v1253 = vunpack.c.l.b16 %v451
    %v1254 = vunpack.c.h.b16 %v451
    %v1255 = vunpack.c.l.b16 %v452
    %v1256 = vunpack.c.h.b16 %v452
    %v1257 = vunpack.c.l.b16 %v453
    %v1258 = vunpack.c.h.b16 %v453
    %v1259 = vunpack.c.l.b16 %v454
    %v1260 = vunpack.c.h.b16 %v454
    %v1261 = vunpack.c.l.b16 %v455
    %v1262 = vunpack.c.h.b16 %v455
    %v1263 = vunpack.c.l.b16 %v456
    %v1264 = vunpack.c.h.b16 %v456
    %v1265 = vunpack.c.l.b16 %v457
    %v1266 = vunpack.c.h.b16 %v457
    %v1267 = vunpack.c.l.b16 %v458
    %v1268 = vunpack.c.h.b16 %v458
    %v1269 = vunpack.c.l.b16 %v459
    %v1270 = vunpack.c.h.b16 %v459
    %v1271 = vunpack.c.l.b16 %v460
    %v1272 = vunpack.c.h.b16 %v460
    %v1273 = vunpack.c.l.b16 %v461
    %v1274 = vunpack.c.h.b16 %v461
    %v1275 = vunpack.c.l.b16 %v462
    %v1276 = vunpack.c.h.b16 %v462
    %v1277 = vunpack.c.l.b16 %v463
    %v1278 = vunpack.c.h.b16 %v463
    %v1279 = vunpack.c.l.b16 %v464
    %v1280 = vunpack.c.h.b16 %v464
    %v1281 = vunpack.c.l.b16 %v465
    %v1282 = vunpack.c.h.b16 %v465
    %v1283 = vunpack.c.l.b16 %v466
    %v1284 = vunpack.c.h.b16 %v466
    %v1285 = vunpack.c.l.b16 %v467
    %v1286 = vunpack.c.h.b16 %v467
    %v1287 = vunpack.c.l.b16 %v468
    %v1288 = vunpack.c.h.b16 %v468
    %v1289 = vunpack.c.l.b16 %v469
    %v1290 = vunpack.c.h.b16 %v469
    %v1291 = vunpack.c.l.b16 %v470
    %v1292 = vunpack.c.h.b16 %v470
    %v1293 = vunpack.c.l.b16 %v471
    %v1294 = vunpack.c.h.b16 %v471
    %v1295 = vunpack.c.l.b16 %v472
    %v1296 = vunpack.c.h.b16 %v472
    %v1297 = vunpack.c.l.b16 %v473
    %v1298 = vunpack.c.h.b16 %v473
    %v1299 = vunpack.c.l.b16 %v474
    %v1300 = vunpack.c.h.b16 %v474
    %v1301 = vunpack.c.l.b16 %v475
    %v1302 = vunpack.c.h.b16 %v475
    %v1303 = vunpack.c.l.b16 %v476
    %v1304 = vunpack.c.h.b16 %v476
    %v1305 = vunpack.c.l.b16 %v477
    %v1306 = vunpack.c.h.b16 %v477
    %v1307 = vunpack.c.l.b16 %v478
    %v1308 = vunpack.c.h.b16 %v478
    %v1309 = vunpack.c.l.b16 %v479
    %v1310 = vunpack.c.h.b16 %v479
    %v1311 = vunpack.c.l.b16 %v480
    %v1312 = vunpack.c.h.b16 %v480
    %v1313 = vunpack.c.l.b16 %v481
    %v1314 = vunpack.c.h.b16 %v481
    %v1315 = vunpack.c.l.b16 %v482
    %v1316 = vunpack.c.h.b16 %v482
    %v1317 = vunpack.c.l.b16 %v483
    %v1318 = vunpack.c.h.b16 %v483
    %v1319 = vunpack.c.l.b16 %v484
    %v1320 = vunpack.c.h.b16 %v484
    %v1321 = vunpack.c.l.b16 %v485
    %v1322 = vunpack.c.h.b16 %v485
    %v1323 = vunpack.c.l.b16 %v486
    %v1324 = vunpack.c.h.b16 %v486
    %v1325 = vunpack.c.l.b16 %v487
    %v1326 = vunpack.c.h.b16 %v487
    %v1327 = vunpack.c.l.b16 %v488
    %v1328 = vunpack.c.h.b16 %v488
    %v1329 = vunpack.c.l.b16 %v489
    %v1330 = vunpack.c.h.b16 %v489
    %v1331 = vunpack.c.l.b16 %v490
    %v1332 = vunpack.c.h.b16 %v490
    %v1333 = vunpack.c.l.b16 %v491
    %v1334 = vunpack.c.h.b16 %v491
    %v1335 = vunpack.c.l.b16 %v492
    %v1336 = vunpack.c.h.b16 %v492
    %v1337 = vunpack.c.l.b16 %v493
    %v1338 = vunpack.c.h.b16 %v493
    %v1339 = vunpack.c.l.b16 %v494
    %v1340 = vunpack.c.h.b16 %v494
    %v1341 = vunpack.c.l.b16 %v495
    %v1342 = vunpack.c.h.b16 %v495
    %v1343 = vunpack.c.l.b16 %v496
    %v1344 = vunpack.c.h.b16 %v496
    %v1345 = vunpack.c.l.b16 %v497
    %v1346 = vunpack.c.h.b16 %v497
    %v1347 = vunpack.c.l.b16 %v498
    %v1348 = vunpack.c.h.b16 %v498
    %v1349 = vunpack.c.l.b16 %v499
    %v1350 = vunpack.c.h.b16 %v499
    %v1351 = vunpack.c.l.b16 %v500
    %v1352 = vunpack.c.h.b16 %v500
    %v1353 = vunpack.c.l.b16 %v501
    %v1354 = vunpack.c.h.b16 %v501
    %v1355 = vunpack.c.l.b16 %v502
    %v1356 = vunpack.c.h.b16 %v502
    %v1357 = vunpack.c.l.b16 %v503
    %v1358 = vunpack.c.h.b16 %v503
    %v1359 = vunpack.c.l.b16 %v504
    %v1360 = vunpack.c.h.b16 %v504
    %v1361 = vunpack.c.l.b16 %v505
    %v1362 = vunpack.c.h.b16 %v505
    %v1363 = vunpack.c.l.b16 %v506
    %v1364 = vunpack.c.h.b16 %v506
    %v1365 = vunpack.c.l.b16 %v507
    %v1366 = vunpack.c.h.b16 %v507
    %v1367 = vunpack.c.l.b16 %v508
    %v1368 = vunpack.c.h.b16 %v508
    %v1369 = vunpack.c.l.b16 %v509
    %v1370 = vunpack.c.h.b16 %v509
    %v1371 = vunpack.c.l.b16 %v510
    %v1372 = vunpack.c.h.b16 %v510
    %v1373 = vunpack.c.l.b16 %v511
    %v1374 = vunpack.c.h.b16 %v511
    %v1375 = vunpack.c.l.b16 %v512
    %v1376 = vunpack.c.h.b16 %v512
    %v1377 = vunpack.c.l.b16 %v513
    %v1378 = vunpack.c.h.b16 %v513
    %v1379 = vunpack.c.l.b16 %v514
    %v1380 = vunpack.c.h.b16 %v514
    %v1381 = vunpack.c.l.b16 %v515
    %v1382 = vunpack.c.h.b16 %v515
    %v1383 = vunpack.c.l.b16 %v516
    %v1384 = vunpack.c.h.b16 %v516
    %v1385 = vunpack.c.l.b16 %v517
    %v1386 = vunpack.c.h.b16 %v517
    %v1387 = vunpack.c.l.b16 %v518
    %v1388 = vunpack.c.h.b16 %v518
    %v1389 = vunpack.c.l.b16 %v519
    %v1390 = vunpack.c.h.b16 %v519
    %v1391 = vunpack.c.l.b16 %v520
    %v1392 = vunpack.c.h.b16 %v520
    %v1393 = vunpack.c.l.b16 %v521
    %v1394 = vunpack.c.h.b16 %v521
    %v1395 = vunpack.c.l.b16 %v522
    %v1396 = vunpack.c.h.b16 %v522
    %v1397 = vunpack.c.l.b16 %v523
    %v1398 = vunpack.c.h.b16 %v523
    %v1399 = vunpack.c.l.b16 %v524
    %v1400 = vunpack.c.h.b16 %v524
    %v1401 = vunpack.c.l.b16 %v525
    %v1402 = vunpack.c.h.b16 %v525
    %v1403 = vunpack.c.l.b16 %v526
    %v1404 = vunpack.c.h.b16 %v526
    %v1405 = vunpack.c.l.b16 %v527
    %v1406 = vunpack.c.h.b16 %v527
    %v1407 = vunpack.c.l.b16 %v528
    %v1408 = vunpack.c.h.b16 %v528
    %v1409 = vunpack.c.l.b16 %v529
    %v1410 = vunpack.c.h.b16 %v529
    %v1411 = vunpack.c.l.b16 %v530
    %v1412 = vunpack.c.h.b16 %v530
    %v1413 = vunpack.c.l.b16 %v531
    %v1414 = vunpack.c.h.b16 %v531
    %v1415 = vunpack.c.l.b16 %v532
    %v1416 = vunpack.c.h.b16 %v532
    %v1417 = vunpack.c.l.b16 %v533
    %v1418 = vunpack.c.h.b16 %v533
    %v1419 = vunpack.c.l.b16 %v534
    %v1420 = vunpack.c.h.b16 %v534
    %v1421 = vunpack.c.l.b16 %v535
    %v1422 = vunpack.c.h.b16 %v535
    %v1423 = vunpack.c.l.b16 %v536
    %v1424 = vunpack.c.h.b16 %v536
    %v1425 = vunpack.c.l.b16 %v537
    %v1426 = vunpack.c.h.b16 %v537
    %v1427 = vunpack.c.l.b16 %v538
    %v1428 = vunpack.c.h.b16 %v538
    %v1429 = vunpack.c.l.b16 %v539
    %v1430 = vunpack.c.h.b16 %v539
    %v1431 = vunpack.c.l.b16 %v540
    %v1432 = vunpack.c.h.b16 %v540
    %v1433 = vunpack.c.l.b16 %v541
    %v1434 = vunpack.c.h.b16 %v541
    %v1435 = vunpack.c.l.b16 %v542
    %v1436 = vunpack.c.h.b16 %v542
    %v1437 = vunpack.c.l.b16 %v543
    %v1438 = vunpack.c.h.b16 %v543
    %v1439 = vunpack.c.l.b16 %v544
    %v1440 = vunpack.c.h.b16 %v544
    %v1441 = vunpack.c.l.b16 %v545
    %v1442 = vunpack.c.h.b16 %v545
    %v1443 = vunpack.c.l.b16 %v546
    %v1444 = vunpack.c.h.b16 %v546
    %v1445 = vunpack.c.l.b16 %v547
    %v1446 = vunpack.c.h.b16 %v547
    %v1447 = vunpack.c.l.b16 %v548
    %v1448 = vunpack.c.h.b16 %v548
    %v1449 = vunpack.c.l.b16 %v549
    %v1450 = vunpack.c.h.b16 %v549
    %v1451 = vunpack.c.l.b16 %v550
    %v1452 = vunpack.c.h.b16 %v550
    %v1453 = vunpack.c.l.b16 %v551
    %v1454 = vunpack.c.h.b16 %v551
    %v1455 = vunpack.c.l.b16 %v552
    %v1456 = vunpack.c.h.b16 %v552
    %v1457 = vunpack.c.l.b16 %v553
    %v1458 = vunpack.c.h.b16 %v553
    %v1459 = vunpack.c.l.b16 %v554
    %v1460 = vunpack.c.h.b16 %v554
    %v1461 = vunpack.c.l.b16 %v555
    %v1462 = vunpack.c.h.b16 %v555
    %v1463 = vunpack.c.l.b16 %v556
    %v1464 = vunpack.c.h.b16 %v556
    %v1465 = vunpack.c.l.b16 %v557
    %v1466 = vunpack.c.h.b16 %v557
    %v1467 = vunpack.c.l.b16 %v558
    %v1468 = vunpack.c.h.b16 %v558
    %v1469 = vunpack.c.l.b16 %v559
    %v1470 = vunpack.c.h.b16 %v559
    %v1471 = vunpack.c.l.b16 %v560
    %v1472 = vunpack.c.h.b16 %v560
    %v1473 = vunpack.c.l.b16 %v561
    %v1474 = vunpack.c.h.b16 %v561
    %v1475 = vunpack.c.l.b16 %v562
    %v1476 = vunpack.c.h.b16 %v562
    %v1477 = vunpack.c.l.b16 %v563
    %v1478 = vunpack.c.h.b16 %v563
    %v1479 = vunpack.c.l.b16 %v564
    %v1480 = vunpack.c.h.b16 %v564
    %v1481 = vunpack.c.l.b16 %v565
    %v1482 = vunpack.c.h.b16 %v565
    %v1483 = vunpack.c.l.b16 %v566
    %v1484 = vunpack.c.h.b16 %v566
    %v1485 = vunpack.c.l.b16 %v567
    %v1486 = vunpack.c.h.b16 %v567
    %v1487 = vunpack.c.l.b16 %v568
    %v1488 = vunpack.c.h.b16 %v568
    %v1489 = vunpack.c.l.b16 %v569
    %v1490 = vunpack.c.h.b16 %v569
    %v1491 = vunpack.c.l.b16 %v570
    %v1492 = vunpack.c.h.b16 %v570
    %v1493 = vunpack.c.l.b16 %v571
    %v1494 = vunpack.c.h.b16 %v571
    %v1495 = vunpack.c.l.b16 %v572
    %v1496 = vunpack.c.h.b16 %v572
    %v1497 = vunpack.c.l.b16 %v573
    %v1498 = vunpack.c.h.b16 %v573
    %v1499 = vunpack.c.l.b16 %v574
    %v1500 = vunpack.c.h.b16 %v574
    %v1501 = vunpack.c.l.b16 %v575
    %v1502 = vunpack.c.h.b16 %v575
    %v1503 = vunpack.c.l.b16 %v576
    %v1504 = vunpack.c.h.b16 %v576
    %v1505 = vunpack.c.l.b16 %v577
    %v1506 = vunpack.c.h.b16 %v577
    %v1507 = vunpack.c.l.b16 %v578
    %v1508 = vunpack.c.h.b16 %v578
    %v1509 = vunpack.c.l.b16 %v579
    %v1510 = vunpack.c.h.b16 %v579
    %v1511 = vunpack.c.l.b16 %v580
    %v1512 = vunpack.c.h.b16 %v580
    %v1513 = vunpack.c.l.b16 %v581
    %v1514 = vunpack.c.h.b16 %v581
    %v1515 = vunpack.c.l.b16 %v582
    %v1516 = vunpack.c.h.b16 %v582
    %v1517 = vunpack.c.l.b16 %v583
    %v1518 = vunpack.c.h.b16 %v583
    %v1519 = vunpack.c.l.b16 %v584
    %v1520 = vunpack.c.h.b16 %v584
    %v1521 = vunpack.c.l.b16 %v585
    %v1522 = vunpack.c.h.b16 %v585
    %v1523 = vunpack.c.l.b16 %v586
    %v1524 = vunpack.c.h.b16 %v586
    %v1525 = vunpack.c.l.b16 %v587
    %v1526 = vunpack.c.h.b16 %v587
    %v1527 = vunpack.c.l.b16 %v588
    %v1528 = vunpack.c.h.b16 %v588
    %v1529 = vunpack.c.l.b16 %v589
    %v1530 = vunpack.c.h.b16 %v589
    %v1531 = vunpack.c.l.b16 %v590
    %v1532 = vunpack.c.h.b16 %v590
    %v1533 = vunpack.c.l.b16 %v591
    %v1534 = vunpack.c.h.b16 %v591
    %v1535 = vunpack.c.l.b16 %v592
    %v1536 = vunpack.c.h.b16 %v592
    %v1537 = vunpack.c.l.b16 %v593
    %v1538 = vunpack.c.h.b16 %v593
    %v1539 = vunpack.c.l.b16 %v594
    %v1540 = vunpack.c.h.b16 %v594
    %v1541 = vunpack.c.l.b16 %v595
    %v1542 = vunpack.c.h.b16 %v595
    %v1543 = vunpack.c.l.b16 %v596
    %v1544 = vunpack.c.h.b16 %v596
    %v1545 = vunpack.c.l.b16 %v597
    %v1546 = vunpack.c.h.b16 %v597
    %v1547 = vunpack.c.l.b16 %v598
    %v1548 = vunpack.c.h.b16 %v598
    %v1549 = vunpack.c.l.b16 %v599
    %v1550 = vunpack.c.h.b16 %v599
    %v1551 = vunpack.c.l.b16 %v600
    %v1552 = vunpack.c.h.b16 %v600
    %v1553 = vunpack.c.l.b16 %v601
    %v1554 = vunpack.c.h.b16 %v601
    %v1555 = vunpack.c.l.b16 %v602
    %v1556 = vunpack.c.h.b16 %v602
    %v1557 = vunpack.c.l.b16 %v603
    %v1558 = vunpack.c.h.b16 %v603
    %v1559 = vunpack.c.l.b16 %v604
    %v1560 = vunpack.c.h.b16 %v604
    %v1561 = vunpack.c.l.b16 %v605
    %v1562 = vunpack.c.h.b16 %v605
    %v1563 = vunpack.c.l.b16 %v606
    %v1564 = vunpack.c.h.b16 %v606
    %v1565 = vunpack.c.l.b16 %v607
    %v1566 = vunpack.c.h.b16 %v607
    %v1567 = vunpack.c.l.b16 %v608
    %v1568 = vunpack.c.h.b16 %v608
    %v1569 = vunpack.c.l.b16 %v609
    %v1570 = vunpack.c.h.b16 %v609
    %v1571 = vunpack.c.l.b16 %v610
    %v1572 = vunpack.c.h.b16 %v610
    %v1573 = vunpack.c.l.b16 %v611
    %v1574 = vunpack.c.h.b16 %v611
    %v1575 = vunpack.c.l.b16 %v612
    %v1576 = vunpack.c.h.b16 %v612
    %v1577 = vunpack.c.l.b16 %v613
    %v1578 = vunpack.c.h.b16 %v613
    %v1579 = vunpack.c.l.b16 %v614
    %v1580 = vunpack.c.h.b16 %v614
    %v1581 = vunpack.c.l.b16 %v615
    %v1582 = vunpack.c.h.b16 %v615
    %v1583 = vunpack.c.l.b16 %v616
    %v1584 = vunpack.c.h.b16 %v616
    %v1585 = vunpack.c.l.b16 %v617
    %v1586 = vunpack.c.h.b16 %v617
    %v1587 = vunpack.c.l.b16 %v618
    %v1588 = vunpack.c.h.b16 %v618
    %v1589 = vunpack.c.l.b16 %v619
    %v1590 = vunpack.c.h.b16 %v619
    %v1591 = vunpack.c.l.b16 %v620
    %v1592 = vunpack.c.h.b16 %v620
    %v1593 = vunpack.c.l.b16 %v621
    %v1594 = vunpack.c.h.b16 %v621
    %v1595 = vunpack.c.l.b16 %v622
    %v1596 = vunpack.c.h.b16 %v622
    %v1597 = vunpack.c.l.b16 %v623
    %v1598 = vunpack.c.h.b16 %v623
    %v1599 = vunpack.c.l.b16 %v624
    %v1600 = vunpack.c.h.b16 %v624
    %v1601 = vunpack.c.l.b16 %v625
    %v1602 = vunpack.c.h.b16 %v625
    %v1603 = vunpack.c.l.b16 %v626
    %v1604 = vunpack.c.h.b16 %v626
    %v1605 = vunpack.c.l.b16 %v627
    %v1606 = vunpack.c.h.b16 %v627
    %v1607 = vunpack.c.l.b16 %v628
    %v1608 = vunpack.c.h.b16 %v628
    %v1609 = vunpack.c.l.b16 %v629
    %v1610 = vunpack.c.h.b16 %v629
    %v1611 = vunpack.c.l.b16 %v630
    %v1612 = vunpack.c.h.b16 %v630
    %v1613 = vunpack.c.l.b16 %v631
    %v1614 = vunpack.c.h.b16 %v631
    %v1615 = vunpack.c.l.b16 %v632
    %v1616 = vunpack.c.h.b16 %v632
    %v1617 = vunpack.c.l.b16 %v633
    %v1618 = vunpack.c.h.b16 %v633
    %v1619 = vunpack.c.l.b16 %v634
    %v1620 = vunpack.c.h.b16 %v634
    %v1621 = vunpack.c.l.b16 %v635
    %v1622 = vunpack.c.h.b16 %v635
    %v1623 = vunpack.c.l.b16 %v636
    %v1624 = vunpack.c.h.b16 %v636
    %v1625 = vunpack.c.l.b16 %v637
    %v1626 = vunpack.c.h.b16 %v637
    %v1627 = vunpack.c.l.b16 %v638
    %v1628 = vunpack.c.h.b16 %v638
    %v1629 = vunpack.c.l.b16 %v639
    %v1630 = vunpack.c.h.b16 %v639
    %v1631 = vunpack.c.l.b16 %v640
    %v1632 = vunpack.c.h.b16 %v640
    %v1633 = vunpack.c.l.b16 %v641
    %v1634 = vunpack.c.h.b16 %v641
    %v1635 = vunpack.c.l.b16 %v642
    %v1636 = vunpack.c.h.b16 %v642
    %v1637 = vunpack.c.l.b16 %v643
    %v1638 = vunpack.c.h.b16 %v643
    %v1639 = vunpack.c.l.b16 %v644
    %v1640 = vunpack.c.h.b16 %v644
    %v1641 = vunpack.c.l.b16 %v645
    %v1642 = vunpack.c.h.b16 %v645
    %v1643 = vunpack.c.l.b16 %v646
    %v1644 = vunpack.c.h.b16 %v646
    %v1645 = vunpack.c.l.b16 %v647
    %v1646 = vunpack.c.h.b16 %v647
    %v1647 = vunpack.c.l.b16 %v648
    %v1648 = vunpack.c.h.b16 %v648
    %v1649 = vunpack.c.l.b16 %v649
    %v1650 = vunpack.c.h.b16 %v649
    %v1651 = vunpack.c.l.b16 %v650
    %v1652 = vunpack.c.h.b16 %v650
    %v1653 = vunpack.c.l.b16 %v651
    %v1654 = vunpack.c.h.b16 %v651
    %v1655 = vunpack.c.l.b16 %v652
    %v1656 = vunpack.c.h.b16 %v652
    %v1657 = vunpack.c.l.b16 %v653
    %v1658 = vunpack.c.h.b16 %v653
    %v1659 = vunpack.c.l.b16 %v654
    %v1660 = vunpack.c.h.b16 %v654
    %v1661 = vunpack.c.l.b16 %v655
    %v1662 = vunpack.c.h.b16 %v655
    %v1663 = vunpack.c.l.b16 %v656
    %v1664 = vunpack.c.h.b16 %v656
    %v1665 = vunpack.c.l.b16 %v657
    %v1666 = vunpack.c.h.b16 %v657
    %v1667 = vunpack.c.l.b16 %v658
    %v1668 = vunpack.c.h.b16 %v658
    %v1669 = vunpack.c.l.b16 %v659
    %v1670 = vunpack.c.h.b16 %v659
    %v1671 = vunpack.c.l.b16 %v660
    %v1672 = vunpack.c.h.b16 %v660
    %v1673 = vunpack.c.l.b16 %v661
    %v1674 = vunpack.c.h.b16 %v661
    %v1675 = vunpack.c.l.b16 %v662
    %v1676 = vunpack.c.h.b16 %v662
    %v1677 = vunpack.c.l.b16 %v663
    %v1678 = vunpack.c.h.b16 %v663
    %v1679 = vunpack.c.l.b16 %v664
    %v1680 = vunpack.c.h.b16 %v664
    %v1681 = vunpack.c.l.b16 %v665
    %v1682 = vunpack.c.h.b16 %v665
    %v1683 = vunpack.c.l.b16 %v666
    %v1684 = vunpack.c.h.b16 %v666
    %v1685 = vunpack.c.l.b16 %v667
    %v1686 = vunpack.c.h.b16 %v667
    %v1687 = vunpack.c.l.b16 %v668
    %v1688 = vunpack.c.h.b16 %v668
    %v1689 = vunpack.c.l.b16 %v669
    %v1690 = vunpack.c.h.b16 %v669
    %v1691 = vunpack.c.l.b16 %v670
    %v1692 = vunpack.c.h.b16 %v670
    %v1693 = vunpack.c.l.b16 %v671
    %v1694 = vunpack.c.h.b16 %v671
    %v1695 = vunpack.c.l.b16 %v672
    %v1696 = vunpack.c.h.b16 %v672
    %v1697 = vunpack.c.l.b16 %v673
    %v1698 = vunpack.c.h.b16 %v673
    %v1699 = vunpack.c.l.b16 %v674
    %v1700 = vunpack.c.h.b16 %v674
    %v1701 = vunpack.c.l.b16 %v675
    %v1702 = vunpack.c.h.b16 %v675
    %v1703 = vunpack.c.l.b16 %v676
    %v1704 = vunpack.c.h.b16 %v676
    %v1705 = vunpack.c.l.b16 %v677
    %v1706 = vunpack.c.h.b16 %v677
    %v1707 = vunpack.c.l.b16 %v678
    %v1708 = vunpack.c.h.b16 %v678
    %v1709 = vunpack.c.l.b16 %v679
    %v1710 = vunpack.c.h.b16 %v679
    %v1711 = vunpack.c.l.b16 %v680
    %v1712 = vunpack.c.h.b16 %v680
    %v1713 = vunpack.c.l.b16 %v681
    %v1714 = vunpack.c.h.b16 %v681
    %v1715 = vunpack.c.l.b16 %v682
    %v1716 = vunpack.c.h.b16 %v682
    %v1717 = vunpack.c.l.b16 %v683
    %v1718 = vunpack.c.h.b16 %v683
    %v1719 = vunpack.c.l.b16 %v684
    %v1720 = vunpack.c.h.b16 %v684
    %v1721 = vunpack.c.l.b16 %v685
    %v1722 = vunpack.c.h.b16 %v685
    %v1723 = vunpack.c.l.b16 %v686
    %v1724 = vunpack.c.h.b16 %v686
    %v1725 = vunpack.c.l.b16 %v687
    %v1726 = vunpack.c.h.b16 %v687
    %v1727 = vunpack.c.l.b16 %v688
    %v1728 = vunpack.c.h.b16 %v688
    %v1729 = vunpack.c.l.b16 %v689
    %v1730 = vunpack.c.h.b16 %v689
    %v1731 = vunpack.c.l.b16 %v690
    %v1732 = vunpack.c.h.b16 %v690
    %v1733 = vunpack.c.l.b16 %v691
    %v1734 = vunpack.c.h.b16 %v691
    %v1735 = vunpack.c.l.b16 %v692
    %v1736 = vunpack.c.h.b16 %v692
    %v1737 = vunpack.c.l.b16 %v693
    %v1738 = vunpack.c.h.b16 %v693
    %v1739 = vunpack.c.l.b16 %v694
    %v1740 = vunpack.c.h.b16 %v694
    %v1741 = vunpack.c.l.b16 %v695
    %v1742 = vunpack.c.h.b16 %v695
    %v1743 = vunpack.c.l.b16 %v696
    %v1744 = vunpack.c.h.b16 %v696
    %v1745 = vunpack.c.l.b16 %v697
    %v1746 = vunpack.c.h.b16 %v697
    %v1747 = vunpack.c.l.b16 %v698
    %v1748 = vunpack.c.h.b16 %v698
    %v1749 = vunpack.c.l.b16 %v699
    %v1750 = vunpack.c.h.b16 %v699
    %v1751 = vunpack.c.l.b16 %v700
    %v1752 = vunpack.c.h.b16 %v700
    %v1753 = vunpack.c.l.b16 %v701
    %v1754 = vunpack.c.h.b16 %v701
    %v1755 = vunpack.c.l.b16 %v702
    %v1756 = vunpack.c.h.b16 %v702
    %v1757 = vunpack.c.l.b16 %v703
    %v1758 = vunpack.c.h.b16 %v703
    %v1759 = vunpack.c.l.b16 %v704
    %v1760 = vunpack.c.h.b16 %v704
    %v1761 = vunpack.c.l.b16 %v705
    %v1762 = vunpack.c.h.b16 %v705
    %v1763 = vunpack.c.l.b16 %v706
    %v1764 = vunpack.c.h.b16 %v706
    %v1765 = vunpack.c.l.b16 %v707
    %v1766 = vunpack.c.h.b16 %v707
    %v1767 = vunpack.c.l.b16 %v708
    %v1768 = vunpack.c.h.b16 %v708
    %v1769 = vunpack.c.l.b16 %v709
    %v1770 = vunpack.c.h.b16 %v709
    %v1771 = vunpack.c.l.b16 %v710
    %v1772 = vunpack.c.h.b16 %v710
    %v1773 = vunpack.c.l.b16 %v711
    %v1774 = vunpack.c.h.b16 %v711
    %v1775 = vunpack.c.l.b16 %v712
    %v1776 = vunpack.c.h.b16 %v712
    %v1777 = vunpack.c.l.b16 %v713
    %v1778 = vunpack.c.h.b16 %v713
    %v1779 = vunpack.c.l.b16 %v714
    %v1780 = vunpack.c.h.b16 %v714
    %v1781 = vunpack.c.l.b16 %v715
    %v1782 = vunpack.c.h.b16 %v715
    %v1783 = vunpack.c.l.b16 %v716
    %v1784 = vunpack.c.h.b16 %v716
    %v1785 = vunpack.c.l.b16 %v717
    %v1786 = vunpack.c.h.b16 %v717
    %v1787 = vunpack.c.l.b16 %v718
    %v1788 = vunpack.c.h.b16 %v718
    %v1789 = vunpack.c.l.b16 %v719
    %v1790 = vunpack.c.h.b16 %v719
    %v1791 = vunpack.c.l.b16 %v720
    %v1792 = vunpack.c.h.b16 %v720
    %v1793 = vunpack.c.l.b16 %v721
    %v1794 = vunpack.c.h.b16 %v721
    %v1795 = vunpack.c.l.b16 %v722
    %v1796 = vunpack.c.h.b16 %v722
    %v1797 = vunpack.c.l.b16 %v723
    %v1798 = vunpack.c.h.b16 %v723
    %v1799 = vunpack.c.l.b16 %v724
    %v1800 = vunpack.c.h.b16 %v724
    %v1801 = vunpack.c.l.b16 %v725
    %v1802 = vunpack.c.h.b16 %v725
    %v1803 = vunpack.c.l.b16 %v726
    %v1804 = vunpack.c.h.b16 %v726
    %v1805 = vunpack.c.l.b16 %v727
    %v1806 = vunpack.c.h.b16 %v727
    %v1807 = vunpack.c.l.b16 %v728
    %v1808 = vunpack.c.h.b16 %v728
    %v1809 = vunpack.c.l.b16 %v729
    %v1810 = vunpack.c.h.b16 %v729
    %v1811 = vunpack.c.l.b16 %v730
    %v1812 = vunpack.c.h.b16 %v730
    %v1813 = vunpack.c.l.b16 %v731
    %v1814 = vunpack.c.h.b16 %v731
    %v1815 = vunpack.c.l.b16 %v732
    %v1816 = vunpack.c.h.b16 %v732
    %v1817 = vunpack.c.l.b16 %v733
    %v1818 = vunpack.c.h.b16 %v733
    %v1819 = vunpack.c.l.b16 %v734
    %v1820 = vunpack.c.h.b16 %v734
    %v1821 = vunpack.c.l.b16 %v735
    %v1822 = vunpack.c.h.b16 %v735
    %v1823 = vunpack.c.l.b16 %v736
    %v1824 = vunpack.c.h.b16 %v736
    %v1825 = vunpack.c.l.b16 %v737
    %v1826 = vunpack.c.h.b16 %v737
    %v1827 = vunpack.c.l.b16 %v738
    %v1828 = vunpack.c.h.b16 %v738
    %v1829 = vunpack.c.l.b16 %v739
    %v1830 = vunpack.c.h.b16 %v739
    %v1831 = vunpack.c.l.b16 %v740
    %v1832 = vunpack.c.h.b16 %v740
    %v1833 = vunpack.c.l.b16 %v741
    %v1834 = vunpack.c.h.b16 %v741
    %v1835 = vunpack.c.l.b16 %v742
    %v1836 = vunpack.c.h.b16 %v742
    %v1837 = vunpack.c.l.b16 %v743
    %v1838 = vunpack.c.h.b16 %v743
    %v1839 = vunpack.c.l.b16 %v744
    %v1840 = vunpack.c.h.b16 %v744
    %v1841 = vunpack.c.l.b16 %v745
    %v1842 = vunpack.c.h.b16 %v745
    %v1843 = vunpack.c.l.b16 %v746
    %v1844 = vunpack.c.h.b16 %v746
    %v1845 = vunpack.c.l.b16 %v747
    %v1846 = vunpack.c.h.b16 %v747
    %v1847 = vunpack.c.l.b16 %v748
    %v1848 = vunpack.c.h.b16 %v748
    %v1849 = vunpack.c.l.b16 %v749
    %v1850 = vunpack.c.h.b16 %v749
    %v1851 = vunpack.c.l.b16 %v750
    %v1852 = vunpack.c.h.b16 %v750
    %v1853 = vunpack.c.l.b16 %v751
    %v1854 = vunpack.c.h.b16 %v751
    %v1855 = vunpack.c.l.b16 %v752
    %v1856 = vunpack.c.h.b16 %v752
    %v1857 = vunpack.c.l.b16 %v753
    %v1858 = vunpack.c.h.b16 %v753
    %v1859 = vunpack.c.l.b16 %v754
    %v1860 = vunpack.c.h.b16 %v754
    %v1861 = vunpack.c.l.b16 %v755
    %v1862 = vunpack.c.h.b16 %v755
    %v1863 = vunpack.c.l.b16 %v756
    %v1864 = vunpack.c.h.b16 %v756
    %v1865 = vunpack.c.l.b16 %v757
    %v1866 = vunpack.c.h.b16 %v757
    %v1867 = vunpack.c.l.b16 %v758
    %v1868 = vunpack.c.h.b16 %v758
    %v1869 = vunpack.c.l.b16 %v759
    %v1870 = vunpack.c.h.b16 %v759
    %v1871 = vunpack.c.l.b16 %v760
    %v1872 = vunpack.c.h.b16 %v760
    %v1873 = vunpack.c.l.b16 %v761
    %v1874 = vunpack.c.h.b16 %v761
    %v1875 = vunpack.c.l.b16 %v762
    %v1876 = vunpack.c.h.b16 %v762
    %v1877 = vunpack.c.l.b16 %v763
    %v1878 = vunpack.c.h.b16 %v763
    %v1879 = vunpack.c.l.b16 %v764
    %v1880 = vunpack.c.h.b16 %v764
    %v1881 = vunpack.c.l.b16 %v765
    %v1882 = vunpack.c.h.b16 %v765
    %v1883 = vunpack.c.l.b16 %v766
    %v1884 = vunpack.c.h.b16 %v766
    %v1885 = vunpack.c.l.b16 %v767
    %v1886 = vunpack.c.h.b16 %v767
    %v1887 = vunpack.c.l.b16 %v768
    %v1888 = vunpack.c.h.b16 %v768
    %v1889 = vunpack.c.l.b16 %v769
    %v1890 = vunpack.c.h.b16 %v769
    %v1891 = vunpack.c.l.b16 %v770
    %v1892 = vunpack.c.h.b16 %v770
    %v1893 = vunpack.c.l.b16 %v771
    %v1894 = vunpack.c.h.b16 %v771
    %v1895 = vunpack.c.l.b16 %v772
    %v1896 = vunpack.c.h.b16 %v772
    %v1897 = vunpack.c.l.b16 %v773
    %v1898 = vunpack.c.h.b16 %v773
    %v1899 = vunpack.c.l.b16 %v774
    %v1900 = vunpack.c.h.b16 %v774
    %v1901 = vunpack.c.l.b16 %v775
    %v1902 = vunpack.c.h.b16 %v775
    %v1903 = vunpack.c.l.b16 %v776
    %v1904 = vunpack.c.h.b16 %v776
    %v1905 = vunpack.c.l.b16 %v777
    %v1906 = vunpack.c.h.b16 %v777
    %v1907 = vunpack.c.l.b16 %v778
    %v1908 = vunpack.c.h.b16 %v778
    %v1909 = vunpack.c.l.b16 %v779
    %v1910 = vunpack.c.h.b16 %v779
    %v1911 = vunpack.c.l.b16 %v780
    %v1912 = vunpack.c.h.b16 %v780
    %v1913 = vunpack.c.l.b16 %v781
    %v1914 = vunpack.c.h.b16 %v781
    %v1915 = vunpack.c.l.b16 %v782
    %v1916 = vunpack.c.h.b16 %v782
    %v1917 = vunpack.c.l.b16 %v783
    %v1918 = vunpack.c.h.b16 %v783
    %v1919 = vunpack.c.l.b16 %v784
    %v1920 = vunpack.c.h.b16 %v784
    %v1921 = vunpack.c.l.b16 %v785
    %v1922 = vunpack.c.h.b16 %v785
    %v1923 = vunpack.c.l.b16 %v786
    %v1924 = vunpack.c.h.b16 %v786
    %v1925 = vunpack.c.l.b16 %v787
    %v1926 = vunpack.c.h.b16 %v787
    %v1927 = vunpack.c.l.b16 %v788
    %v1928 = vunpack.c.h.b16 %v788
    %v1929 = vunpack.c.l.b16 %v789
    %v1930 = vunpack.c.h.b16 %v789
    %v1931 = vunpack.c.l.b16 %v790
    %v1932 = vunpack.c.h.b16 %v790
    %v1933 = vunpack.c.l.b16 %v791
    %v1934 = vunpack.c.h.b16 %v791
    %v1935 = vunpack.c.l.b16 %v792
    %v1936 = vunpack.c.h.b16 %v792
    %v1937 = vunpack.c.l.b16 %v793
    %v1938 = vunpack.c.h.b16 %v793
    %v1939 = vunpack.c.l.b16 %v794
    %v1940 = vunpack.c.h.b16 %v794
    %v1941 = vunpack.c.l.b16 %v795
    %v1942 = vunpack.c.h.b16 %v795
    %v1943 = vunpack.c.l.b16 %v796
    %v1944 = vunpack.c.h.b16 %v796
    %v1945 = vunpack.c.l.b16 %v797
    %v1946 = vunpack.c.h.b16 %v797
    %v1947 = vunpack.c.l.b16 %v798
    %v1948 = vunpack.c.h.b16 %v798
    %v1949 = vunpack.c.l.b16 %v799
    %v1950 = vunpack.c.h.b16 %v799
    %v1951 = vunpack.c.l.b16 %v800
    %v1952 = vunpack.c.h.b16 %v800
    %v1953 = vunpack.c.l.b16 %v801
    %v1954 = vunpack.c.h.b16 %v801
    %v1955 = vunpack.c.l.b16 %v802
    %v1956 = vunpack.c.h.b16 %v802
    %v1957 = vunpack.c.l.b16 %v803
    %v1958 = vunpack.c.h.b16 %v803
    %v1959 = vunpack.c.l.b16 %v804
    %v1960 = vunpack.c.h.b16 %v804
    %v1961 = vunpack.c.l.b16 %v805
    %v1962 = vunpack.c.h.b16 %v805
    %v1963 = vunpack.c.l.b16 %v806
    %v1964 = vunpack.c.h.b16 %v806
    %v1965 = vunpack.c.l.b16 %v807
    %v1966 = vunpack.c.h.b16 %v807
    %v1967 = vunpack.c.l.b16 %v808
    %v1968 = vunpack.c.h.b16 %v808
    %v1969 = vunpack.c.l.b16 %v809
    %v1970 = vunpack.c.h.b16 %v809
    %v1971 = vunpack.c.l.b16 %v810
    %v1972 = vunpack.c.h.b16 %v810
    %v1973 = vunpack.c.l.b16 %v811
    %v1974 = vunpack.c.h.b16 %v811
    %v1975 = vunpack.c.l.b16 %v812
    %v1976 = vunpack.c.h.b16 %v812
    %v1977 = vpack.c.b16 %v1211, %v1209
    %v1978 = vpack.c.b16 %v1212, %v1210
    %v1979 = vpack.c.b16 %v1215, %v1213
    %v1980 = vpack.c.b16 %v1216, %v1214
    %v1981 = vpack.c.b16 %v1219, %v1217
    %v1982 = vpack.c.b16 %v1220, %v1218
    %v1983 = vpack.c.b16 %v1223, %v1221
    %v1984 = vpack.c.b16 %v1224, %v1222
    %v1985 = vpack.c.b16 %v1227, %v1225
    %v1986 = vpack.c.b16 %v1228, %v1226
    %v1987 = vpack.c.b16 %v1231, %v1229
    %v1988 = vpack.c.b16 %v1232, %v1230
    %v1989 = vpack.c.b16 %v1235, %v1233
    %v1990 = vpack.c.b16 %v1236, %v1234
    %v1991 = vpack.c.b16 %v1239, %v1237
    %v1992 = vpack.c.b16 %v1240, %v1238
    %v1993 = vpack.c.b16 %v1243, %v1241
    %v1994 = vpack.c.b16 %v1244, %v1242
    %v1995 = vpack.c.b16 %v1247, %v1245
    %v1996 = vpack.c.b16 %v1248, %v1246
    %v1997 = vpack.c.b16 %v1251, %v1249
    %v1998 = vpack.c.b16 %v1252, %v1250
    %v1999 = vpack.c.b16 %v1255, %v1253
    %v2000 = vpack.c.b16 %v1256, %v1254
    %v2001 = vpack.c.b16 %v1259, %v1257
    %v2002 = vpack.c.b16 %v1260, %v1258
    %v2003 = vpack.c.b16 %v1263, %v1261
    %v2004 = vpack.c.b16 %v1264, %v1262
    %v2005 = vpack.c.b16 %v1267, %v1265
    %v2006 = vpack.c.b16 %v1268, %v1266
    %v2007 = vpack.c.b16 %v1271, %v1269
    %v2008 = vpack.c.b16 %v1272, %v1270
    %v2009 = vpack.c.b16 %v1275, %v1273
    %v2010 = vpack.c.b16 %v1276, %v1274
    %v2011 = vpack.c.b16 %v1279, %v1277
    %v2012 = vpack.c.b16 %v1280, %v1278
    %v2013 = vpack.c.b16 %v1283, %v1281
    %v2014 = vpack.c.b16 %v1284, %v1282
    %v2015 = vpack.c.b16 %v1287, %v1285
    %v2016 = vpack.c.b16 %v1288, %v1286
    %v2017 = vpack.c.b16 %v1291, %v1289
    %v2018 = vpack.c.b16 %v1292, %v1290
    %v2019 = vpack.c.b16 %v1295, %v1293
    %v2020 = vpack.c.b16 %v1296, %v1294
    %v2021 = vpack.c.b16 %v1299, %v1297
    %v2022 = vpack.c.b16 %v1300, %v1298
    %v2023 = vpack.c.b16 %v1303, %v1301
    %v2024 = vpack.c.b16 %v1304, %v1302
    %v2025 = vpack.c.b16 %v1307, %v1305
    %v2026 = vpack.c.b16 %v1308, %v1306
    %v2027 = vpack.c.b16 %v1311, %v1309
    %v2028 = vpack.c.b16 %v1312, %v1310
    %v2029 = vpack.c.b16 %v1315, %v1313
    %v2030 = vpack.c.b16 %v1316, %v1314
    %v2031 = vpack.c.b16 %v1319, %v1317
    %v2032 = vpack.c.b16 %v1320, %v1318
    %v2033 = vpack.c.b16 %v1323, %v1321
    %v2034 = vpack.c.b16 %v1324, %v1322
    %v2035 = vpack.c.b16 %v1327, %v1325
    %v2036 = vpack.c.b16 %v1328, %v1326
    %v2037 = vpack.c.b16 %v1331, %v1329
    %v2038 = vpack.c.b16 %v1332, %v1330
    %v2039 = vpack.c.b16 %v1335, %v1333
    %v2040 = vpack.c.b16 %v1336, %v1334
    %v2041 = vpack.c.b16 %v1339, %v1337
    %v2042 = vpack.c.b16 %v1340, %v1338
    %v2043 = vpack.c.b16 %v1343, %v1341
    %v2044 = vpack.c.b16 %v1344, %v1342
    %v2045 = vpack.c.b16 %v1347, %v1345
    %v2046 = vpack.c.b16 %v1348, %v1346
    %v2047 = vpack.c.b16 %v1351, %v1349
    %v2048 = vpack.c.b16 %v1352, %v1350
    %v2049 = vpack.c.b16 %v1355, %v1353
    %v2050 = vpack.c.b16 %v1356, %v1354
    %v2051 = vpack.c.b16 %v1359, %v1357
    %v2052 = vpack.c.b16 %v1360, %v1358
    %v2053 = vpack.c.b16 %v1363, %v1361
    %v2054 = vpack.c.b16 %v1364, %v1362
    %v2055 = vpack.c.b16 %v1367, %v1365
    %v2056 = vpack.c.b16 %v1368, %v1366
    %v2057 = vpack.c.b16 %v1371, %v1369
    %v2058 = vpack.c.b16 %v1372, %v1370
    %v2059 = vpack.c.b16 %v1375, %v1373
    %v2060 = vpack.c.b16 %v1376, %v1374
    %v2061 = vpack.c.b16 %v1379, %v1377
    %v2062 = vpack.c.b16 %v1380, %v1378
    %v2063 = vpack.c.b16 %v1383, %v1381
    %v2064 = vpack.c.b16 %v1384, %v1382
    %v2065 = vpack.c.b16 %v1387, %v1385
    %v2066 = vpack.c.b16 %v1388, %v1386
    %v2067 = vpack.c.b16 %v1391, %v1389
    %v2068 = vpack.c.b16 %v1392, %v1390
    %v2069 = vpack.c.b16 %v1395, %v1393
    %v2070 = vpack.c.b16 %v1396, %v1394
    %v2071 = vpack.c.b16 %v1399, %v1397
    %v2072 = vpack.c.b16 %v1400, %v1398
    %v2073 = vpack.c.b16 %v1403, %v1401
    %v2074 = vpack.c.b16 %v1404, %v1402
    %v2075 = vpack.c.b16 %v1407, %v1405
    %v2076 = vpack.c.b16 %v1408, %v1406
    %v2077 = vpack.c.b16 %v1411, %v1409
    %v2078 = vpack.c.b16 %v1412, %v1410
    %v2079 = vpack.c.b16 %v1415, %v1413
    %v2080 = vpack.c.b16 %v1416, %v1414
    %v2081 = vpack.c.b16 %v1419, %v1417
    %v2082 = vpack.c.b16 %v1420, %v1418
    %v2083 = vpack.c.b16 %v1423, %v1421
    %v2084 = vpack.c.b16 %v1424, %v1422
    %v2085 = vpack.c.b16 %v1427, %v1425
    %v2086 = vpack.c.b16 %v1428, %v1426
    %v2087 = vpack.c.b16 %v1431, %v1429
    %v2088 = vpack.c.b16 %v1432, %v1430
    %v2089 = vpack.c.b16 %v1435, %v1433
    %v2090 = vpack.c.b16 %v1436, %v1434
    %v2091 = vpack.c.b16 %v1439, %v1437
    %v2092 = vpack.c.b16 %v1440, %v1438
    %v2093 = vpack.c.b16 %v1443, %v1441
    %v2094 = vpack.c.b16 %v1444, %v1442
    %v2095 = vpack.c.b16 %v1447, %v1445
    %v2096 = vpack.c.b16 %v1448, %v1446
    %v2097 = vpack.c.b16 %v1451, %v1449
    %v2098 = vpack.c.b16 %v1452, %v1450
    %v2099 = vpack.c.b16 %v1455, %v1453
    %v2100 = vpack.c.b16 %v1456, %v1454
    %v2101 = vpack.c.b16 %v1459, %v1457
    %v2102 = vpack.c.b16 %v1460, %v1458
    %v2103 = vpack.c.b16 %v1463, %v1461
    %v2104 = vpack.c.b16 %v1464, %v1462
    %v2105 = vpack.c.b16 %v1467, %v1465
    %v2106 = vpack.c.b16 %v1468, %v1466
    %v2107 = vpack.c.b16 %v1471, %v1469
    %v2108 = vpack.c.b16 %v1472, %v1470
    %v2109 = vpack.c.b16 %v1475, %v1473
    %v2110 = vpack.c.b16 %v1476, %v1474
    %v2111 = vpack.c.b16 %v1479, %v1477
    %v2112 = vpack.c.b16 %v1480, %v1478
    %v2113 = vpack.c.b16 %v1483, %v1481
    %v2114 = vpack.c.b16 %v1484, %v1482
    %v2115 = vpack.c.b16 %v1487, %v1485
    %v2116 = vpack.c.b16 %v1488, %v1486
    %v2117 = vpack.c.b16 %v1491, %v1489
    %v2118 = vpack.c.b16 %v1492, %v1490
    %v2119 = vpack.c.b16 %v1495, %v1493
    %v2120 = vpack.c.b16 %v1496, %v1494
    %v2121 = vpack.c.b16 %v1499, %v1497
    %v2122 = vpack.c.b16 %v1500, %v1498
    %v2123 = vpack.c.b16 %v1503, %v1501
    %v2124 = vpack.c.b16 %v1504, %v1502
    %v2125 = vpack.c.b16 %v1507, %v1505
    %v2126 = vpack.c.b16 %v1508, %v1506
    %v2127 = vpack.c.b16 %v1511, %v1509
    %v2128 = vpack.c.b16 %v1512, %v1510
    %v2129 = vpack.c.b16 %v1515, %v1513
    %v2130 = vpack.c.b16 %v1516, %v1514
    %v2131 = vpack.c.b16 %v1519, %v1517
    %v2132 = vpack.c.b16 %v1520, %v1518
    %v2133 = vpack.c.b16 %v1523, %v1521
    %v2134 = vpack.c.b16 %v1524, %v1522
    %v2135 = vpack.c.b16 %v1527, %v1525
    %v2136 = vpack.c.b16 %v1528, %v1526
    %v2137 = vpack.c.b16 %v1531, %v1529
    %v2138 = vpack.c.b16 %v1532, %v1530
    %v2139 = vpack.c.b16 %v1535, %v1533
    %v2140 = vpack.c.b16 %v1536, %v1534
    %v2141 = vpack.c.b16 %v1539, %v1537
    %v2142 = vpack.c.b16 %v1540, %v1538
    %v2143 = vpack.c.b16 %v1543, %v1541
    %v2144 = vpack.c.b16 %v1544, %v1542
    %v2145 = vpack.c.b16 %v1547, %v1545
    %v2146 = vpack.c.b16 %v1548, %v1546
    %v2147 = vpack.c.b16 %v1551, %v1549
    %v2148 = vpack.c.b16 %v1552, %v1550
    %v2149 = vpack.c.b16 %v1555, %v1553
    %v2150 = vpack.c.b16 %v1556, %v1554
    %v2151 = vpack.c.b16 %v1559, %v1557
    %v2152 = vpack.c.b16 %v1560, %v1558
    %v2153 = vpack.c.b16 %v1563, %v1561
    %v2154 = vpack.c.b16 %v1564, %v1562
    %v2155 = vpack.c.b16 %v1567, %v1565
    %v2156 = vpack.c.b16 %v1568, %v1566
    %v2157 = vpack.c.b16 %v1571, %v1569
    %v2158 = vpack.c.b16 %v1572, %v1570
    %v2159 = vpack.c.b16 %v1575, %v1573
    %v2160 = vpack.c.b16 %v1576, %v1574
    %v2161 = vpack.c.b16 %v1579, %v1577
    %v2162 = vpack.c.b16 %v1580, %v1578
    %v2163 = vpack.c.b16 %v1583, %v1581
    %v2164 = vpack.c.b16 %v1584, %v1582
    %v2165 = vpack.c.b16 %v1587, %v1585
    %v2166 = vpack.c.b16 %v1588, %v1586
    %v2167 = vpack.c.b16 %v1591, %v1589
    %v2168 = vpack.c.b16 %v1592, %v1590
    %v2169 = vpack.c.b16 %v1595, %v1593
    %v2170 = vpack.c.b16 %v1596, %v1594
    %v2171 = vpack.c.b16 %v1599, %v1597
    %v2172 = vpack.c.b16 %v1600, %v1598
    %v2173 = vpack.c.b16 %v1603, %v1601
    %v2174 = vpack.c.b16 %v1604, %v1602
    %v2175 = vpack.c.b16 %v1607, %v1605
    %v2176 = vpack.c.b16 %v1608, %v1606
    %v2177 = vpack.c.b16 %v1611, %v1609
    %v2178 = vpack.c.b16 %v1612, %v1610
    %v2179 = vpack.c.b16 %v1615, %v1613
    %v2180 = vpack.c.b16 %v1616, %v1614
    %v2181 = vpack.c.b16 %v1619, %v1617
    %v2182 = vpack.c.b16 %v1620, %v1618
    %v2183 = vpack.c.b16 %v1623, %v1621
    %v2184 = vpack.c.b16 %v1624, %v1622
    %v2185 = vpack.c.b16 %v1627, %v1625
    %v2186 = vpack.c.b16 %v1628, %v1626
    %v2187 = vpack.c.b16 %v1631, %v1629
    %v2188 = vpack.c.b16 %v1632, %v1630
    %v2189 = vpack.c.b16 %v1635, %v1633
    %v2190 = vpack.c.b16 %v1636, %v1634
    %v2191 = vpack.c.b16 %v1639, %v1637
    %v2192 = vpack.c.b16 %v1640, %v1638
    %v2193 = vpack.c.b16 %v1643, %v1641
    %v2194 = vpack.c.b16 %v1644, %v1642
    %v2195 = vpack.c.b16 %v1647, %v1645
    %v2196 = vpack.c.b16 %v1648, %v1646
    %v2197 = vpack.c.b16 %v1651, %v1649
    %v2198 = vpack.c.b16 %v1652, %v1650
    %v2199 = vpack.c.b16 %v1655, %v1653
    %v2200 = vpack.c.b16 %v1656, %v1654
    %v2201 = vpack.c.b16 %v1659, %v1657
    %v2202 = vpack.c.b16 %v1660, %v1658
    %v2203 = vpack.c.b16 %v1663, %v1661
    %v2204 = vpack.c.b16 %v1664, %v1662
    %v2205 = vpack.c.b16 %v1667, %v1665
    %v2206 = vpack.c.b16 %v1668, %v1666
    %v2207 = vpack.c.b16 %v1671, %v1669
    %v2208 = vpack.c.b16 %v1672, %v1670
    %v2209 = vpack.c.b16 %v1675, %v1673
    %v2210 = vpack.c.b16 %v1676, %v1674
    %v2211 = vpack.c.b16 %v1679, %v1677
    %v2212 = vpack.c.b16 %v1680, %v1678
    %v2213 = vpack.c.b16 %v1683, %v1681
    %v2214 = vpack.c.b16 %v1684, %v1682
    %v2215 = vpack.c.b16 %v1687, %v1685
    %v2216 = vpack.c.b16 %v1688, %v1686
    %v2217 = vpack.c.b16 %v1691, %v1689
    %v2218 = vpack.c.b16 %v1692, %v1690
    %v2219 = vpack.c.b16 %v1695, %v1693
    %v2220 = vpack.c.b16 %v1696, %v1694
    %v2221 = vpack.c.b16 %v1699, %v1697
    %v2222 = vpack.c.b16 %v1700, %v1698
    %v2223 = vpack.c.b16 %v1703, %v1701
    %v2224 = vpack.c.b16 %v1704, %v1702
    %v2225 = vpack.c.b16 %v1707, %v1705
    %v2226 = vpack.c.b16 %v1708, %v1706
    %v2227 = vpack.c.b16 %v1711, %v1709
    %v2228 = vpack.c.b16 %v1712, %v1710
    %v2229 = vpack.c.b16 %v1715, %v1713
    %v2230 = vpack.c.b16 %v1716, %v1714
    %v2231 = vpack.c.b16 %v1719, %v1717
    %v2232 = vpack.c.b16 %v1720, %v1718
    %v2233 = vpack.c.b16 %v1723, %v1721
    %v2234 = vpack.c.b16 %v1724, %v1722
    %v2235 = vpack.c.b16 %v1727, %v1725
    %v2236 = vpack.c.b16 %v1728, %v1726
    %v2237 = vpack.c.b16 %v1731, %v1729
    %v2238 = vpack.c.b16 %v1732, %v1730
    %v2239 = vpack.c.b16 %v1735, %v1733
    %v2240 = vpack.c.b16 %v1736, %v1734
    %v2241 = vpack.c.b16 %v1739, %v1737
    %v2242 = vpack.c.b16 %v1740, %v1738
    %v2243 = vpack.c.b16 %v1743, %v1741
    %v2244 = vpack.c.b16 %v1744, %v1742
    %v2245 = vpack.c.b16 %v1747, %v1745
    %v2246 = vpack.c.b16 %v1748, %v1746
    %v2247 = vpack.c.b16 %v1751, %v1749
    %v2248 = vpack.c.b16 %v1752, %v1750
    %v2249 = vpack.c.b16 %v1755, %v1753
    %v2250 = vpack.c.b16 %v1756, %v1754
    %v2251 = vpack.c.b16 %v1759, %v1757
    %v2252 = vpack.c.b16 %v1760, %v1758
    %v2253 = vpack.c.b16 %v1763, %v1761
    %v2254 = vpack.c.b16 %v1764, %v1762
    %v2255 = vpack.c.b16 %v1767, %v1765
    %v2256 = vpack.c.b16 %v1768, %v1766
    %v2257 = vpack.c.b16 %v1771, %v1769
    %v2258 = vpack.c.b16 %v1772, %v1770
    %v2259 = vpack.c.b16 %v1775, %v1773
    %v2260 = vpack.c.b16 %v1776, %v1774
    %v2261 = vpack.c.b16 %v1779, %v1777
    %v2262 = vpack.c.b16 %v1780, %v1778
    %v2263 = vpack.c.b16 %v1783, %v1781
    %v2264 = vpack.c.b16 %v1784, %v1782
    %v2265 = vpack.c.b16 %v1787, %v1785
    %v2266 = vpack.c.b16 %v1788, %v1786
    %v2267 = vpack.c.b16 %v1791, %v1789
    %v2268 = vpack.c.b16 %v1792, %v1790
    %v2269 = vpack.c.b16 %v1795, %v1793
    %v2270 = vpack.c.b16 %v1796, %v1794
    %v2271 = vpack.c.b16 %v1799, %v1797
    %v2272 = vpack.c.b16 %v1800, %v1798
    %v2273 = vpack.c.b16 %v1803, %v1801
    %v2274 = vpack.c.b16 %v1804, %v1802
    %v2275 = vpack.c.b16 %v1807, %v1805
    %v2276 = vpack.c.b16 %v1808, %v1806
    %v2277 = vpack.c.b16 %v1811, %v1809
    %v2278 = vpack.c.b16 %v1812, %v1810
    %v2279 = vpack.c.b16 %v1815, %v1813
    %v2280 = vpack.c.b16 %v1816, %v1814
    %v2281 = vpack.c.b16 %v1819, %v1817
    %v2282 = vpack.c.b16 %v1820, %v1818
    %v2283 = vpack.c.b16 %v1823, %v1821
    %v2284 = vpack.c.b16 %v1824, %v1822
    %v2285 = vpack.c.b16 %v1827, %v1825
    %v2286 = vpack.c.b16 %v1828, %v1826
    %v2287 = vpack.c.b16 %v1831, %v1829
    %v2288 = vpack.c.b16 %v1832, %v1830
    %v2289 = vpack.c.b16 %v1835, %v1833
    %v2290 = vpack.c.b16 %v1836, %v1834
    %v2291 = vpack.c.b16 %v1839, %v1837
    %v2292 = vpack.c.b16 %v1840, %v1838
    %v2293 = vpack.c.b16 %v1843, %v1841
    %v2294 = vpack.c.b16 %v1844, %v1842
    %v2295 = vpack.c.b16 %v1847, %v1845
    %v2296 = vpack.c.b16 %v1848, %v1846
    %v2297 = vpack.c.b16 %v1851, %v1849
    %v2298 = vpack.c.b16 %v1852, %v1850
    %v2299 = vpack.c.b16 %v1855, %v1853
    %v2300 = vpack.c.b16 %v1856, %v1854
    %v2301 = vpack.c.b16 %v1859, %v1857
    %v2302 = vpack.c.b16 %v1860, %v1858
    %v2303 = vpack.c.b16 %v1863, %v1861
    %v2304 = vpack.c.b16 %v1864, %v1862
    %v2305 = vpack.c.b16 %v1867, %v1865
    %v2306 = vpack.c.b16 %v1868, %v1866
    %v2307 = vpack.c.b16 %v1871, %v1869
    %v2308 = vpack.c.b16 %v1872, %v1870
    %v2309 = vpack.c.b16 %v1875, %v1873
    %v2310 = vpack.c.b16 %v1876, %v1874
    %v2311 = vpack.c.b16 %v1879, %v1877
    %v2312 = vpack.c.b16 %v1880, %v1878
    %v2313 = vpack.c.b16 %v1883, %v1881
    %v2314 = vpack.c.b16 %v1884, %v1882
    %v2315 = vpack.c.b16 %v1887, %v1885
    %v2316 = vpack.c.b16 %v1888, %v1886
    %v2317 = vpack.c.b16 %v1891, %v1889
    %v2318 = vpack.c.b16 %v1892, %v1890
    %v2319 = vpack.c.b16 %v1895, %v1893
    %v2320 = vpack.c.b16 %v1896, %v1894
    %v2321 = vpack.c.b16 %v1899, %v1897
    %v2322 = vpack.c.b16 %v1900, %v1898
    %v2323 = vpack.c.b16 %v1903, %v1901
    %v2324 = vpack.c.b16 %v1904, %v1902
    %v2325 = vpack.c.b16 %v1907, %v1905
    %v2326 = vpack.c.b16 %v1908, %v1906
    %v2327 = vpack.c.b16 %v1911, %v1909
    %v2328 = vpack.c.b16 %v1912, %v1910
    %v2329 = vpack.c.b16 %v1915, %v1913
    %v2330 = vpack.c.b16 %v1916, %v1914
    %v2331 = vpack.c.b16 %v1919, %v1917
    %v2332 = vpack.c.b16 %v1920, %v1918
    %v2333 = vpack.c.b16 %v1923, %v1921
    %v2334 = vpack.c.b16 %v1924, %v1922
    %v2335 = vpack.c.b16 %v1927, %v1925
    %v2336 = vpack.c.b16 %v1928, %v1926
    %v2337 = vpack.c.b16 %v1931, %v1929
    %v2338 = vpack.c.b16 %v1932, %v1930
    %v2339 = vpack.c.b16 %v1935, %v1933
    %v2340 = vpack.c.b16 %v1936, %v1934
    %v2341 = vpack.c.b16 %v1939, %v1937
    %v2342 = vpack.c.b16 %v1940, %v1938
    %v2343 = vpack.c.b16 %v1943, %v1941
    %v2344 = vpack.c.b16 %v1944, %v1942
    %v2345 = vpack.c.b16 %v1947, %v1945
    %v2346 = vpack.c.b16 %v1948, %v1946
    %v2347 = vpack.c.b16 %v1951, %v1949
    %v2348 = vpack.c.b16 %v1952, %v1950
    %v2349 = vpack.c.b16 %v1955, %v1953
    %v2350 = vpack.c.b16 %v1956, %v1954
    %v2351 = vpack.c.b16 %v1959, %v1957
    %v2352 = vpack.c.b16 %v1960, %v1958
    %v2353 = vpack.c.b16 %v1963, %v1961
    %v2354 = vpack.c.b16 %v1964, %v1962
    %v2355 = vpack.c.b16 %v1967, %v1965
    %v2356 = vpack.c.b16 %v1968, %v1966
    %v2357 = vpack.c.b16 %v1971, %v1969
    %v2358 = vpack.c.b16 %v1972, %v1970
    %v2359 = vpack.c.b16 %v1975, %v1973
    %v2360 = vpack.c.b16 %v1976, %v1974
    %2745 = vmatprep.subr.bf16.mxu0 %v1978
    %2746 = vmatpush1.bf16.msra.mxu0 %v1977
    %2747 = vmatprep.subr.bf16.mxu0 %v1980
    %2748 = vmatpush1.bf16.msra.mxu0 %v1979
    %2749 = vmatprep.subr.bf16.mxu0 %v1982
    %2750 = vmatpush1.bf16.msra.mxu0 %v1981
    %2751 = vmatprep.subr.bf16.mxu0 %v1984
    %2752 = vmatpush1.bf16.msra.mxu0 %v1983
    %2753 = vmatprep.subr.bf16.mxu0 %v1986
    %2754 = vmatpush1.bf16.msra.mxu0 %v1985
    %2755 = vmatprep.subr.bf16.mxu0 %v1988
    %2756 = vmatpush1.bf16.msra.mxu0 %v1987
    %2757 = vmatprep.subr.bf16.mxu0 %v1990
    %2758 = vmatpush1.bf16.msra.mxu0 %v1989
    %2759 = vmatprep.subr.bf16.mxu0 %v1992
    %2760 = vmatpush1.bf16.msra.mxu0 %v1991
    %2761 = vmatprep.subr.bf16.mxu0 %v1994
    %2762 = vmatpush1.bf16.msra.mxu0 %v1993
    %2763 = vmatprep.subr.bf16.mxu0 %v1996
    %2764 = vmatpush1.bf16.msra.mxu0 %v1995
    %2765 = vmatprep.subr.bf16.mxu0 %v1998
    %2766 = vmatpush1.bf16.msra.mxu0 %v1997
    %2767 = vmatprep.subr.bf16.mxu0 %v2000
    %2768 = vmatpush1.bf16.msra.mxu0 %v1999
    %2769 = vmatprep.subr.bf16.mxu0 %v2002
    %2770 = vmatpush1.bf16.msra.mxu0 %v2001
    %2771 = vmatprep.subr.bf16.mxu0 %v2004
    %2772 = vmatpush1.bf16.msra.mxu0 %v2003
    %2773 = vmatprep.subr.bf16.mxu0 %v2006
    %2774 = vmatpush1.bf16.msra.mxu0 %v2005
    %2775 = vmatprep.subr.bf16.mxu0 %v2008
    %2776 = vmatpush1.bf16.msra.mxu0 %v2007
    %2777 = vmatprep.mubr.bf16.mxu0 %v406
    %2778 = vmatmul.mubr.bf16.gmra.mrb[0].mxu0 %v405
    %v2779 = vpop.f32.mrb[0].mxu0
    %v2780 = vadd.f32 %v818, %v2779
    %v2781 = vpop.f32.mrb[0].mxu0
    %v2782 = vadd.f32 %v822, %v2781
    %v2783 = vpop.f32.mrb[0].mxu0
    %v2784 = vpop.f32.mrb[0].mxu0
    %2785 = vdwg.mxu0
    %2786 = vmatprep.subr.bf16.mxu0 %v2010
    %2787 = vmatpush1.bf16.msra.mxu0 %v2009
    %2788 = vmatprep.subr.bf16.mxu0 %v2012
    %2789 = vmatpush1.bf16.msra.mxu0 %v2011
    %2790 = vmatprep.subr.bf16.mxu0 %v2014
    %2791 = vmatpush1.bf16.msra.mxu0 %v2013
    %2792 = vmatprep.subr.bf16.mxu0 %v2016
    %2793 = vmatpush1.bf16.msra.mxu0 %v2015
    %2794 = vmatprep.subr.bf16.mxu0 %v2018
    %2795 = vmatpush1.bf16.msra.mxu0 %v2017
    %2796 = vmatprep.subr.bf16.mxu0 %v2020
    %2797 = vmatpush1.bf16.msra.mxu0 %v2019
    %2798 = vmatprep.subr.bf16.mxu0 %v2022
    %2799 = vmatpush1.bf16.msra.mxu0 %v2021
    %2800 = vmatprep.subr.bf16.mxu0 %v2024
    %2801 = vmatpush1.bf16.msra.mxu0 %v2023
    %2802 = vmatprep.subr.bf16.mxu0 %v2026
    %2803 = vmatpush1.bf16.msra.mxu0 %v2025
    %2804 = vmatprep.subr.bf16.mxu0 %v2028
    %2805 = vmatpush1.bf16.msra.mxu0 %v2027
    %2806 = vmatprep.subr.bf16.mxu0 %v2030
    %2807 = vmatpush1.bf16.msra.mxu0 %v2029
    %2808 = vmatprep.subr.bf16.mxu0 %v2032
    %2809 = vmatpush1.bf16.msra.mxu0 %v2031
    %2810 = vmatprep.subr.bf16.mxu0 %v2034
    %2811 = vmatpush1.bf16.msra.mxu0 %v2033
    %2812 = vmatprep.subr.bf16.mxu0 %v2036
    %2813 = vmatpush1.bf16.msra.mxu0 %v2035
    %2814 = vmatprep.subr.bf16.mxu0 %v2038
    %2815 = vmatpush1.bf16.msra.mxu0 %v2037
    %2816 = vmatprep.subr.bf16.mxu0 %v2040
    %2817 = vmatpush1.bf16.msra.mxu0 %v2039
    %2818 = vmatprep.mubr.bf16.mxu0 %v408
    %2819 = vmatmul.mubr.bf16.gmra.mrb[0].mxu0 %v407
    %v2820 = vpop.f32.mrb[0].mxu0
    %v2821 = vadd.f32 %v2780, %v2820
    %v2822 = vpop.f32.mrb[0].mxu0
    %v2823 = vadd.f32 %v2782, %v2822
    %v2824 = vpop.f32.mrb[0].mxu0
    %v2825 = vpop.f32.mrb[0].mxu0
    %2826 = vdwg.mxu0
    %2827 = vmatprep.subr.bf16.mxu0 %v2042
    %2828 = vmatpush1.bf16.msra.mxu0 %v2041
    %2829 = vmatprep.subr.bf16.mxu0 %v2044
    %2830 = vmatpush1.bf16.msra.mxu0 %v2043
    %2831 = vmatprep.subr.bf16.mxu0 %v2046
    %2832 = vmatpush1.bf16.msra.mxu0 %v2045
    %2833 = vmatprep.subr.bf16.mxu0 %v2048
    %2834 = vmatpush1.bf16.msra.mxu0 %v2047
    %2835 = vmatprep.subr.bf16.mxu0 %v2050
    %2836 = vmatpush1.bf16.msra.mxu0 %v2049
    %2837 = vmatprep.subr.bf16.mxu0 %v2052
    %2838 = vmatpush1.bf16.msra.mxu0 %v2051
    %2839 = vmatprep.subr.bf16.mxu0 %v2054
    %2840 = vmatpush1.bf16.msra.mxu0 %v2053
    %2841 = vmatprep.subr.bf16.mxu0 %v2056
    %2842 = vmatpush1.bf16.msra.mxu0 %v2055
    %2843 = vmatprep.subr.bf16.mxu0 %v2058
    %2844 = vmatpush1.bf16.msra.mxu0 %v2057
    %2845 = vmatprep.subr.bf16.mxu0 %v2060
    %2846 = vmatpush1.bf16.msra.mxu0 %v2059
    %2847 = vmatprep.subr.bf16.mxu0 %v2062
    %2848 = vmatpush1.bf16.msra.mxu0 %v2061
    %2849 = vmatprep.subr.bf16.mxu0 %v2064
    %2850 = vmatpush1.bf16.msra.mxu0 %v2063
    %2851 = vmatprep.subr.bf16.mxu0 %v2066
    %2852 = vmatpush1.bf16.msra.mxu0 %v2065
    %2853 = vmatprep.subr.bf16.mxu0 %v2068
    %2854 = vmatpush1.bf16.msra.mxu0 %v2067
    %2855 = vmatprep.subr.bf16.mxu0 %v2070
    %2856 = vmatpush1.bf16.msra.mxu0 %v2069
    %2857 = vmatprep.subr.bf16.mxu0 %v2072
    %2858 = vmatpush1.bf16.msra.mxu0 %v2071
    %2859 = vmatprep.mubr.bf16.mxu0 %v410
    %2860 = vmatmul.mubr.bf16.gmra.mrb[0].mxu0 %v409
    %v2861 = vpop.f32.mrb[0].mxu0
    %v2862 = vadd.f32 %v2821, %v2861
    %v2863 = vpop.f32.mrb[0].mxu0
    %v2864 = vadd.f32 %v2823, %v2863
    %v2865 = vpop.f32.mrb[0].mxu0
    %v2866 = vpop.f32.mrb[0].mxu0
    %2867 = vdwg.mxu0
    %2868 = vmatprep.subr.bf16.mxu0 %v2074
    %2869 = vmatpush1.bf16.msra.mxu0 %v2073
    %2870 = vmatprep.subr.bf16.mxu0 %v2076
    %2871 = vmatpush1.bf16.msra.mxu0 %v2075
    %2872 = vmatprep.subr.bf16.mxu0 %v2078
    %2873 = vmatpush1.bf16.msra.mxu0 %v2077
    %2874 = vmatprep.subr.bf16.mxu0 %v2080
    %2875 = vmatpush1.bf16.msra.mxu0 %v2079
    %2876 = vmatprep.subr.bf16.mxu0 %v2082
    %2877 = vmatpush1.bf16.msra.mxu0 %v2081
    %2878 = vmatprep.subr.bf16.mxu0 %v2084
    %2879 = vmatpush1.bf16.msra.mxu0 %v2083
    %2880 = vmatprep.subr.bf16.mxu0 %v2086
    %2881 = vmatpush1.bf16.msra.mxu0 %v2085
    %2882 = vmatprep.subr.bf16.mxu0 %v2088
    %2883 = vmatpush1.bf16.msra.mxu0 %v2087
    %2884 = vmatprep.subr.bf16.mxu0 %v2090
    %2885 = vmatpush1.bf16.msra.mxu0 %v2089
    %2886 = vmatprep.subr.bf16.mxu0 %v2092
    %2887 = vmatpush1.bf16.msra.mxu0 %v2091
    %2888 = vmatprep.subr.bf16.mxu0 %v2094
    %2889 = vmatpush1.bf16.msra.mxu0 %v2093
    %2890 = vmatprep.subr.bf16.mxu0 %v2096
    %2891 = vmatpush1.bf16.msra.mxu0 %v2095
    %2892 = vmatprep.subr.bf16.mxu0 %v2098
    %2893 = vmatpush1.bf16.msra.mxu0 %v2097
    %2894 = vmatprep.subr.bf16.mxu0 %v2100
    %2895 = vmatpush1.bf16.msra.mxu0 %v2099
    %2896 = vmatprep.subr.bf16.mxu0 %v2102
    %2897 = vmatpush1.bf16.msra.mxu0 %v2101
    %2898 = vmatprep.subr.bf16.mxu0 %v2104
    %2899 = vmatpush1.bf16.msra.mxu0 %v2103
    %2900 = vmatprep.mubr.bf16.mxu0 %v412
    %2901 = vmatmul.mubr.bf16.gmra.mrb[0].mxu0 %v411
    %v2902 = vpop.f32.mrb[0].mxu0
    %v2903 = vadd.f32 %v2862, %v2902
    %v2904 = vpop.f32.mrb[0].mxu0
    %v2905 = vadd.f32 %v2864, %v2904
    %v2906 = vpop.f32.mrb[0].mxu0
    %v2907 = vpop.f32.mrb[0].mxu0
    %2908 = vdwg.mxu0
    %2909 = vmatprep.subr.bf16.mxu0 %v2106
    %2910 = vmatpush1.bf16.msra.mxu0 %v2105
    %2911 = vmatprep.subr.bf16.mxu0 %v2108
    %2912 = vmatpush1.bf16.msra.mxu0 %v2107
    %2913 = vmatprep.subr.bf16.mxu0 %v2110
    %2914 = vmatpush1.bf16.msra.mxu0 %v2109
    %2915 = vmatprep.subr.bf16.mxu0 %v2112
    %2916 = vmatpush1.bf16.msra.mxu0 %v2111
    %2917 = vmatprep.subr.bf16.mxu0 %v2114
    %2918 = vmatpush1.bf16.msra.mxu0 %v2113
    %2919 = vmatprep.subr.bf16.mxu0 %v2116
    %2920 = vmatpush1.bf16.msra.mxu0 %v2115
    %2921 = vmatprep.subr.bf16.mxu0 %v2118
    %2922 = vmatpush1.bf16.msra.mxu0 %v2117
    %2923 = vmatprep.subr.bf16.mxu0 %v2120
    %2924 = vmatpush1.bf16.msra.mxu0 %v2119
    %2925 = vmatprep.subr.bf16.mxu0 %v2122
    %2926 = vmatpush1.bf16.msra.mxu0 %v2121
    %2927 = vmatprep.subr.bf16.mxu0 %v2124
    %2928 = vmatpush1.bf16.msra.mxu0 %v2123
    %2929 = vmatprep.subr.bf16.mxu0 %v2126
    %2930 = vmatpush1.bf16.msra.mxu0 %v2125
    %2931 = vmatprep.subr.bf16.mxu0 %v2128
    %2932 = vmatpush1.bf16.msra.mxu0 %v2127
    %2933 = vmatprep.subr.bf16.mxu0 %v2130
    %2934 = vmatpush1.bf16.msra.mxu0 %v2129
    %2935 = vmatprep.subr.bf16.mxu0 %v2132
    %2936 = vmatpush1.bf16.msra.mxu0 %v2131
    %2937 = vmatprep.subr.bf16.mxu0 %v2134
    %2938 = vmatpush1.bf16.msra.mxu0 %v2133
    %2939 = vmatprep.subr.bf16.mxu0 %v2136
    %2940 = vmatpush1.bf16.msra.mxu0 %v2135
    %2941 = vmatprep.mubr.bf16.mxu0 %v414
    %2942 = vmatmul.mubr.bf16.gmra.mrb[0].mxu0 %v413
    %v2943 = vpop.f32.mrb[0].mxu0
    %v2944 = vadd.f32 %v2903, %v2943
    %v2945 = vpop.f32.mrb[0].mxu0
    %v2946 = vadd.f32 %v2905, %v2945
    %v2947 = vpop.f32.mrb[0].mxu0
    %v2948 = vpop.f32.mrb[0].mxu0
    %2949 = vdwg.mxu0
    %2950 = vmatprep.subr.bf16.mxu0 %v2138
    %2951 = vmatpush1.bf16.msra.mxu0 %v2137
    %2952 = vmatprep.subr.bf16.mxu0 %v2140
    %2953 = vmatpush1.bf16.msra.mxu0 %v2139
    %2954 = vmatprep.subr.bf16.mxu0 %v2142
    %2955 = vmatpush1.bf16.msra.mxu0 %v2141
    %2956 = vmatprep.subr.bf16.mxu0 %v2144
    %2957 = vmatpush1.bf16.msra.mxu0 %v2143
    %2958 = vmatprep.subr.bf16.mxu0 %v2146
    %2959 = vmatpush1.bf16.msra.mxu0 %v2145
    %2960 = vmatprep.subr.bf16.mxu0 %v2148
    %2961 = vmatpush1.bf16.msra.mxu0 %v2147
    %2962 = vmatprep.subr.bf16.mxu0 %v2150
    %2963 = vmatpush1.bf16.msra.mxu0 %v2149
    %2964 = vmatprep.subr.bf16.mxu0 %v2152
    %2965 = vmatpush1.bf16.msra.mxu0 %v2151
    %2966 = vmatprep.subr.bf16.mxu0 %v2154
    %2967 = vmatpush1.bf16.msra.mxu0 %v2153
    %2968 = vmatprep.subr.bf16.mxu0 %v2156
    %2969 = vmatpush1.bf16.msra.mxu0 %v2155
    %2970 = vmatprep.subr.bf16.mxu0 %v2158
    %2971 = vmatpush1.bf16.msra.mxu0 %v2157
    %2972 = vmatprep.subr.bf16.mxu0 %v2160
    %2973 = vmatpush1.bf16.msra.mxu0 %v2159
    %2974 = vmatprep.subr.bf16.mxu0 %v2162
    %2975 = vmatpush1.bf16.msra.mxu0 %v2161
    %2976 = vmatprep.subr.bf16.mxu0 %v2164
    %2977 = vmatpush1.bf16.msra.mxu0 %v2163
    %2978 = vmatprep.subr.bf16.mxu0 %v2166
    %2979 = vmatpush1.bf16.msra.mxu0 %v2165
    %2980 = vmatprep.subr.bf16.mxu0 %v2168
    %2981 = vmatpush1.bf16.msra.mxu0 %v2167
    %2982 = vmatprep.mubr.bf16.mxu0 %v416
    %2983 = vmatmul.mubr.bf16.gmra.mrb[0].mxu0 %v415
    %v2984 = vpop.f32.mrb[0].mxu0
    %v2985 = vadd.f32 %v2944, %v2984
    %v2986 = vpop.f32.mrb[0].mxu0
    %v2987 = vadd.f32 %v2946, %v2986
    %v2988 = vpop.f32.mrb[0].mxu0
    %v2989 = vpop.f32.mrb[0].mxu0
    %2990 = vdwg.mxu0
    %2991 = vmatprep.subr.bf16.mxu0 %v2170
    %2992 = vmatpush1.bf16.msra.mxu0 %v2169
    %2993 = vmatprep.subr.bf16.mxu0 %v2172
    %2994 = vmatpush1.bf16.msra.mxu0 %v2171
    %2995 = vmatprep.subr.bf16.mxu0 %v2174
    %2996 = vmatpush1.bf16.msra.mxu0 %v2173
    %2997 = vmatprep.subr.bf16.mxu0 %v2176
    %2998 = vmatpush1.bf16.msra.mxu0 %v2175
    %2999 = vmatprep.subr.bf16.mxu0 %v2178
    %3000 = vmatpush1.bf16.msra.mxu0 %v2177
    %3001 = vmatprep.subr.bf16.mxu0 %v2180
    %3002 = vmatpush1.bf16.msra.mxu0 %v2179
    %3003 = vmatprep.subr.bf16.mxu0 %v2182
    %3004 = vmatpush1.bf16.msra.mxu0 %v2181
    %3005 = vmatprep.subr.bf16.mxu0 %v2184
    %3006 = vmatpush1.bf16.msra.mxu0 %v2183
    %3007 = vmatprep.subr.bf16.mxu0 %v2186
    %3008 = vmatpush1.bf16.msra.mxu0 %v2185
    %3009 = vmatprep.subr.bf16.mxu0 %v2188
    %3010 = vmatpush1.bf16.msra.mxu0 %v2187
    %3011 = vmatprep.subr.bf16.mxu0 %v2190
    %3012 = vmatpush1.bf16.msra.mxu0 %v2189
    %3013 = vmatprep.subr.bf16.mxu0 %v2192
    %3014 = vmatpush1.bf16.msra.mxu0 %v2191
    %3015 = vmatprep.subr.bf16.mxu0 %v2194
    %3016 = vmatpush1.bf16.msra.mxu0 %v2193
    %3017 = vmatprep.subr.bf16.mxu0 %v2196
    %3018 = vmatpush1.bf16.msra.mxu0 %v2195
    %3019 = vmatprep.subr.bf16.mxu0 %v2198
    %3020 = vmatpush1.bf16.msra.mxu0 %v2197
    %3021 = vmatprep.subr.bf16.mxu0 %v2200
    %3022 = vmatpush1.bf16.msra.mxu0 %v2199
    %3023 = vmatprep.mubr.bf16.mxu0 %v418
    %3024 = vmatmul.mubr.bf16.gmra.mrb[0].mxu0 %v417
    %v3025 = vpop.f32.mrb[0].mxu0
    %v3026 = vadd.f32 %v2985, %v3025
    %v3027 = vpop.f32.mrb[0].mxu0
    %v3028 = vadd.f32 %v2987, %v3027
    %v3029 = vpop.f32.mrb[0].mxu0
    %v3030 = vpop.f32.mrb[0].mxu0
    %3031 = vdwg.mxu0
    %3032 = vmatprep.subr.bf16.mxu0 %v2202
    %3033 = vmatpush1.bf16.msra.mxu0 %v2201
    %3034 = vmatprep.subr.bf16.mxu0 %v2204
    %3035 = vmatpush1.bf16.msra.mxu0 %v2203
    %3036 = vmatprep.subr.bf16.mxu0 %v2206
    %3037 = vmatpush1.bf16.msra.mxu0 %v2205
    %3038 = vmatprep.subr.bf16.mxu0 %v2208
    %3039 = vmatpush1.bf16.msra.mxu0 %v2207
    %3040 = vmatprep.subr.bf16.mxu0 %v2210
    %3041 = vmatpush1.bf16.msra.mxu0 %v2209
    %3042 = vmatprep.subr.bf16.mxu0 %v2212
    %3043 = vmatpush1.bf16.msra.mxu0 %v2211
    %3044 = vmatprep.subr.bf16.mxu0 %v2214
    %3045 = vmatpush1.bf16.msra.mxu0 %v2213
    %3046 = vmatprep.subr.bf16.mxu0 %v2216
    %3047 = vmatpush1.bf16.msra.mxu0 %v2215
    %3048 = vmatprep.subr.bf16.mxu0 %v2218
    %3049 = vmatpush1.bf16.msra.mxu0 %v2217
    %3050 = vmatprep.subr.bf16.mxu0 %v2220
    %3051 = vmatpush1.bf16.msra.mxu0 %v2219
    %3052 = vmatprep.subr.bf16.mxu0 %v2222
    %3053 = vmatpush1.bf16.msra.mxu0 %v2221
    %3054 = vmatprep.subr.bf16.mxu0 %v2224
    %3055 = vmatpush1.bf16.msra.mxu0 %v2223
    %3056 = vmatprep.subr.bf16.mxu0 %v2226
    %3057 = vmatpush1.bf16.msra.mxu0 %v2225
    %3058 = vmatprep.subr.bf16.mxu0 %v2228
    %3059 = vmatpush1.bf16.msra.mxu0 %v2227
    %3060 = vmatprep.subr.bf16.mxu0 %v2230
    %3061 = vmatpush1.bf16.msra.mxu0 %v2229
    %3062 = vmatprep.subr.bf16.mxu0 %v2232
    %3063 = vmatpush1.bf16.msra.mxu0 %v2231
    %3064 = vmatprep.mubr.bf16.mxu0 %v420
    %3065 = vmatmul.mubr.bf16.gmra.mrb[0].mxu0 %v419
    %v3066 = vpop.f32.mrb[0].mxu0
    %v3067 = vadd.f32 %v3026, %v3066
    %v3068 = vpop.f32.mrb[0].mxu0
    %v3069 = vadd.f32 %v3028, %v3068
    %v3070 = vpop.f32.mrb[0].mxu0
    %v3071 = vpop.f32.mrb[0].mxu0
    %3072 = vdwg.mxu0
    %3073 = vmatprep.subr.bf16.mxu0 %v2234
    %3074 = vmatpush1.bf16.msra.mxu0 %v2233
    %3075 = vmatprep.subr.bf16.mxu0 %v2236
    %3076 = vmatpush1.bf16.msra.mxu0 %v2235
    %3077 = vmatprep.subr.bf16.mxu0 %v2238
    %3078 = vmatpush1.bf16.msra.mxu0 %v2237
    %3079 = vmatprep.subr.bf16.mxu0 %v2240
    %3080 = vmatpush1.bf16.msra.mxu0 %v2239
    %3081 = vmatprep.subr.bf16.mxu0 %v2242
    %3082 = vmatpush1.bf16.msra.mxu0 %v2241
    %3083 = vmatprep.subr.bf16.mxu0 %v2244
    %3084 = vmatpush1.bf16.msra.mxu0 %v2243
    %3085 = vmatprep.subr.bf16.mxu0 %v2246
    %3086 = vmatpush1.bf16.msra.mxu0 %v2245
    %3087 = vmatprep.subr.bf16.mxu0 %v2248
    %3088 = vmatpush1.bf16.msra.mxu0 %v2247
    %3089 = vmatprep.subr.bf16.mxu0 %v2250
    %3090 = vmatpush1.bf16.msra.mxu0 %v2249
    %3091 = vmatprep.subr.bf16.mxu0 %v2252
    %3092 = vmatpush1.bf16.msra.mxu0 %v2251
    %3093 = vmatprep.subr.bf16.mxu0 %v2254
    %3094 = vmatpush1.bf16.msra.mxu0 %v2253
    %3095 = vmatprep.subr.bf16.mxu0 %v2256
    %3096 = vmatpush1.bf16.msra.mxu0 %v2255
    %3097 = vmatprep.subr.bf16.mxu0 %v2258
    %3098 = vmatpush1.bf16.msra.mxu0 %v2257
    %3099 = vmatprep.subr.bf16.mxu0 %v2260
    %3100 = vmatpush1.bf16.msra.mxu0 %v2259
    %3101 = vmatprep.subr.bf16.mxu0 %v2262
    %3102 = vmatpush1.bf16.msra.mxu0 %v2261
    %3103 = vmatprep.subr.bf16.mxu0 %v2264
    %3104 = vmatpush1.bf16.msra.mxu0 %v2263
    %3105 = vmatprep.mubr.bf16.mxu0 %v422
    %3106 = vmatmul.mubr.bf16.gmra.mrb[0].mxu0 %v421
    %v3107 = vpop.f32.mrb[0].mxu0
    %v3108 = vadd.f32 %v3067, %v3107
    %v3109 = vpop.f32.mrb[0].mxu0
    %v3110 = vadd.f32 %v3069, %v3109
    %v3111 = vpop.f32.mrb[0].mxu0
    %v3112 = vpop.f32.mrb[0].mxu0
    %3113 = vdwg.mxu0
    %3114 = vmatprep.subr.bf16.mxu0 %v2266
    %3115 = vmatpush1.bf16.msra.mxu0 %v2265
    %3116 = vmatprep.subr.bf16.mxu0 %v2268
    %3117 = vmatpush1.bf16.msra.mxu0 %v2267
    %3118 = vmatprep.subr.bf16.mxu0 %v2270
    %3119 = vmatpush1.bf16.msra.mxu0 %v2269
    %3120 = vmatprep.subr.bf16.mxu0 %v2272
    %3121 = vmatpush1.bf16.msra.mxu0 %v2271
    %3122 = vmatprep.subr.bf16.mxu0 %v2274
    %3123 = vmatpush1.bf16.msra.mxu0 %v2273
    %3124 = vmatprep.subr.bf16.mxu0 %v2276
    %3125 = vmatpush1.bf16.msra.mxu0 %v2275
    %3126 = vmatprep.subr.bf16.mxu0 %v2278
    %3127 = vmatpush1.bf16.msra.mxu0 %v2277
    %3128 = vmatprep.subr.bf16.mxu0 %v2280
    %3129 = vmatpush1.bf16.msra.mxu0 %v2279
    %3130 = vmatprep.subr.bf16.mxu0 %v2282
    %3131 = vmatpush1.bf16.msra.mxu0 %v2281
    %3132 = vmatprep.subr.bf16.mxu0 %v2284
    %3133 = vmatpush1.bf16.msra.mxu0 %v2283
    %3134 = vmatprep.subr.bf16.mxu0 %v2286
    %3135 = vmatpush1.bf16.msra.mxu0 %v2285
    %3136 = vmatprep.subr.bf16.mxu0 %v2288
    %3137 = vmatpush1.bf16.msra.mxu0 %v2287
    %3138 = vmatprep.subr.bf16.mxu0 %v2290
    %3139 = vmatpush1.bf16.msra.mxu0 %v2289
    %3140 = vmatprep.subr.bf16.mxu0 %v2292
    %3141 = vmatpush1.bf16.msra.mxu0 %v2291
    %3142 = vmatprep.subr.bf16.mxu0 %v2294
    %3143 = vmatpush1.bf16.msra.mxu0 %v2293
    %3144 = vmatprep.subr.bf16.mxu0 %v2296
    %3145 = vmatpush1.bf16.msra.mxu0 %v2295
    %3146 = vmatprep.mubr.bf16.mxu0 %v424
    %3147 = vmatmul.mubr.bf16.gmra.mrb[0].mxu0 %v423
    %v3148 = vpop.f32.mrb[0].mxu0
    %v3149 = vadd.f32 %v3108, %v3148
    %v3150 = vpop.f32.mrb[0].mxu0
    %v3151 = vadd.f32 %v3110, %v3150
    %v3152 = vpop.f32.mrb[0].mxu0
    %v3153 = vpop.f32.mrb[0].mxu0
    %3154 = vdwg.mxu0
    %3155 = vmatprep.subr.bf16.mxu0 %v2298
    %3156 = vmatpush1.bf16.msra.mxu0 %v2297
    %3157 = vmatprep.subr.bf16.mxu0 %v2300
    %3158 = vmatpush1.bf16.msra.mxu0 %v2299
    %3159 = vmatprep.subr.bf16.mxu0 %v2302
    %3160 = vmatpush1.bf16.msra.mxu0 %v2301
    %3161 = vmatprep.subr.bf16.mxu0 %v2304
    %3162 = vmatpush1.bf16.msra.mxu0 %v2303
    %3163 = vmatprep.subr.bf16.mxu0 %v2306
    %3164 = vmatpush1.bf16.msra.mxu0 %v2305
    %3165 = vmatprep.subr.bf16.mxu0 %v2308
    %3166 = vmatpush1.bf16.msra.mxu0 %v2307
    %3167 = vmatprep.subr.bf16.mxu0 %v2310
    %3168 = vmatpush1.bf16.msra.mxu0 %v2309
    %3169 = vmatprep.subr.bf16.mxu0 %v2312
    %3170 = vmatpush1.bf16.msra.mxu0 %v2311
    %3171 = vmatprep.subr.bf16.mxu0 %v2314
    %3172 = vmatpush1.bf16.msra.mxu0 %v2313
    %3173 = vmatprep.subr.bf16.mxu0 %v2316
    %3174 = vmatpush1.bf16.msra.mxu0 %v2315
    %3175 = vmatprep.subr.bf16.mxu0 %v2318
    %3176 = vmatpush1.bf16.msra.mxu0 %v2317
    %3177 = vmatprep.subr.bf16.mxu0 %v2320
    %3178 = vmatpush1.bf16.msra.mxu0 %v2319
    %3179 = vmatprep.subr.bf16.mxu0 %v2322
    %3180 = vmatpush1.bf16.msra.mxu0 %v2321
    %3181 = vmatprep.subr.bf16.mxu0 %v2324
    %3182 = vmatpush1.bf16.msra.mxu0 %v2323
    %3183 = vmatprep.subr.bf16.mxu0 %v2326
    %3184 = vmatpush1.bf16.msra.mxu0 %v2325
    %3185 = vmatprep.subr.bf16.mxu0 %v2328
    %3186 = vmatpush1.bf16.msra.mxu0 %v2327
    %3187 = vmatprep.mubr.bf16.mxu0 %v426
    %3188 = vmatmul.mubr.bf16.gmra.mrb[0].mxu0 %v425
    %v3189 = vpop.f32.mrb[0].mxu0
    %v3190 = vadd.f32 %v3149, %v3189
    %v3191 = vpop.f32.mrb[0].mxu0
    %v3192 = vadd.f32 %v3151, %v3191
    %v3193 = vpop.f32.mrb[0].mxu0
    %v3194 = vpop.f32.mrb[0].mxu0
    %3195 = vdwg.mxu0
    %3196 = vmatprep.subr.bf16.mxu0 %v2330
    %3197 = vmatpush1.bf16.msra.mxu0 %v2329
    %3198 = vmatprep.subr.bf16.mxu0 %v2332
    %3199 = vmatpush1.bf16.msra.mxu0 %v2331
    %3200 = vmatprep.subr.bf16.mxu0 %v2334
    %3201 = vmatpush1.bf16.msra.mxu0 %v2333
    %3202 = vmatprep.subr.bf16.mxu0 %v2336
    %3203 = vmatpush1.bf16.msra.mxu0 %v2335
    %3204 = vmatprep.subr.bf16.mxu0 %v2338
    %3205 = vmatpush1.bf16.msra.mxu0 %v2337
    %3206 = vmatprep.subr.bf16.mxu0 %v2340
    %3207 = vmatpush1.bf16.msra.mxu0 %v2339
    %3208 = vmatprep.subr.bf16.mxu0 %v2342
    %3209 = vmatpush1.bf16.msra.mxu0 %v2341
    %3210 = vmatprep.subr.bf16.mxu0 %v2344
    %3211 = vmatpush1.bf16.msra.mxu0 %v2343
    %3212 = vmatprep.subr.bf16.mxu0 %v2346
    %3213 = vmatpush1.bf16.msra.mxu0 %v2345
    %3214 = vmatprep.subr.bf16.mxu0 %v2348
    %3215 = vmatpush1.bf16.msra.mxu0 %v2347
    %3216 = vmatprep.subr.bf16.mxu0 %v2350
    %3217 = vmatpush1.bf16.msra.mxu0 %v2349
    %3218 = vmatprep.subr.bf16.mxu0 %v2352
    %3219 = vmatpush1.bf16.msra.mxu0 %v2351
    %3220 = vmatprep.subr.bf16.mxu0 %v2354
    %3221 = vmatpush1.bf16.msra.mxu0 %v2353
    %3222 = vmatprep.subr.bf16.mxu0 %v2356
    %3223 = vmatpush1.bf16.msra.mxu0 %v2355
    %3224 = vmatprep.subr.bf16.mxu0 %v2358
    %3225 = vmatpush1.bf16.msra.mxu0 %v2357
    %3226 = vmatprep.subr.bf16.mxu0 %v2360
    %3227 = vmatpush1.bf16.msra.mxu0 %v2359
    %3228 = vmatprep.mubr.bf16.mxu0 %v428
    %3229 = vmatmul.mubr.bf16.gmra.mrb[0].mxu0 %v427
    %v3230 = vpop.f32.mrb[0].mxu0
    %v3231 = vadd.f32 %v3190, %v3230
    %v3232 = vpop.f32.mrb[0].mxu0
    %v3233 = vadd.f32 %v3192, %v3232
    %v3234 = vpop.f32.mrb[0].mxu0
    %v3235 = vpop.f32.mrb[0].mxu0
    %3236 = vdwg.mxu0
    %v3237 = vmax.f32 %v3231, 0.0
    %v3238 = vmax.f32 %v3233, 0.0
    %v3239 = vpack.c.bf16 %v3237, %v3237
    %v3240 = vpack.c.bf16 %v3238, %v3238
    %v3241 = vld [vmem:[#allocation8] sm:$0xff]
    %v3242 = vld [vmem:[#allocation8 + $0x8] sm:$0xff]
    %v3243 = vld [vmem:[#allocation8 + $0x10] sm:$0xff]
    %v3244 = vld [vmem:[#allocation8 + $0x18] sm:$0xff]
    %v3245 = vld [vmem:[#allocation8 + $0x20] sm:$0xff]
    %v3246 = vld [vmem:[#allocation8 + $0x28] sm:$0xff]
    %v3247 = vld [vmem:[#allocation8 + $0x30] sm:$0xff]
    %v3248 = vld [vmem:[#allocation8 + $0x38] sm:$0xff]
    %v3249 = vld [vmem:[#allocation8 + $0x40] sm:$0xff]
    %v3250 = vld [vmem:[#allocation8 + $0x48] sm:$0xff]
    %v3251 = vld [vmem:[#allocation8 + $0x50] sm:$0xff]
    %v3252 = vld [vmem:[#allocation8 + $0x58] sm:$0xff]
    %v3253 = vld [vmem:[#allocation8 + $0x60] sm:$0xff]
    %v3254 = vld [vmem:[#allocation8 + $0x68] sm:$0xff]
    %v3255 = vld [vmem:[#allocation8 + $0x70] sm:$0xff]
    %v3256 = vld [vmem:[#allocation8 + $0x78] sm:$0xff]
    %v3257 = vld [vmem:[#allocation8 + $0x80] sm:$0xff]
    %v3258 = vld [vmem:[#allocation8 + $0x88] sm:$0xff]
    %v3259 = vld [vmem:[#allocation8 + $0x90] sm:$0xff]
    %v3260 = vld [vmem:[#allocation8 + $0x98] sm:$0xff]
    %v3261 = vld [vmem:[#allocation8 + $0xa0] sm:$0xff]
    %v3262 = vld [vmem:[#allocation8 + $0xa8] sm:$0xff]
    %v3263 = vld [vmem:[#allocation8 + $0xb0] sm:$0xff]
    %v3264 = vld [vmem:[#allocation8 + $0xb8] sm:$0xff]
    %v3265 = vld [vmem:[#allocation8 + $0xc0] sm:$0xff]
    %v3266 = vld [vmem:[#allocation8 + $0xc8] sm:$0xff]
    %v3267 = vld [vmem:[#allocation8 + $0xd0] sm:$0xff]
    %v3268 = vld [vmem:[#allocation8 + $0xd8] sm:$0xff]
    %v3269 = vld [vmem:[#allocation8 + $0xe0] sm:$0xff]
    %v3270 = vld [vmem:[#allocation8 + $0xe8] sm:$0xff]
    %v3271 = vld [vmem:[#allocation8 + $0xf0] sm:$0xff]
    %v3272 = vld [vmem:[#allocation8 + $0xf8] sm:$0xff]
    %v3273 = vld [vmem:[#allocation10] sm:$0x3]
    %v3275 = vlaneseq
    %v3276 = vshrl.u32 %v3275, 7
    %v3277 = vsub.s32 0, %v3276
    %v3278 = vrot.slane %v3273, %v3277
    %v3279 = vlaneseq
    %v3280 = vshrl.u32 %v3279, 7
    %v3281 = vsub.s32 1, %v3280
    %v3282 = vrot.slane %v3273, %v3281
    %v3317 = vunpack.c.l.b16 %v3241
    %v3318 = vunpack.c.h.b16 %v3241
    %v3319 = vunpack.c.l.b16 %v3242
    %v3320 = vunpack.c.h.b16 %v3242
    %v3321 = vunpack.c.l.b16 %v3243
    %v3322 = vunpack.c.h.b16 %v3243
    %v3323 = vunpack.c.l.b16 %v3244
    %v3324 = vunpack.c.h.b16 %v3244
    %v3325 = vunpack.c.l.b16 %v3245
    %v3326 = vunpack.c.h.b16 %v3245
    %v3327 = vunpack.c.l.b16 %v3246
    %v3328 = vunpack.c.h.b16 %v3246
    %v3329 = vunpack.c.l.b16 %v3247
    %v3330 = vunpack.c.h.b16 %v3247
    %v3331 = vunpack.c.l.b16 %v3248
    %v3332 = vunpack.c.h.b16 %v3248
    %v3333 = vunpack.c.l.b16 %v3249
    %v3334 = vunpack.c.h.b16 %v3249
    %v3335 = vunpack.c.l.b16 %v3250
    %v3336 = vunpack.c.h.b16 %v3250
    %v3337 = vunpack.c.l.b16 %v3251
    %v3338 = vunpack.c.h.b16 %v3251
    %v3339 = vunpack.c.l.b16 %v3252
    %v3340 = vunpack.c.h.b16 %v3252
    %v3341 = vunpack.c.l.b16 %v3253
    %v3342 = vunpack.c.h.b16 %v3253
    %v3343 = vunpack.c.l.b16 %v3254
    %v3344 = vunpack.c.h.b16 %v3254
    %v3345 = vunpack.c.l.b16 %v3255
    %v3346 = vunpack.c.h.b16 %v3255
    %v3347 = vunpack.c.l.b16 %v3256
    %v3348 = vunpack.c.h.b16 %v3256
    %v3349 = vunpack.c.l.b16 %v3257
    %v3350 = vunpack.c.h.b16 %v3257
    %v3351 = vunpack.c.l.b16 %v3258
    %v3352 = vunpack.c.h.b16 %v3258
    %v3353 = vunpack.c.l.b16 %v3259
    %v3354 = vunpack.c.h.b16 %v3259
    %v3355 = vunpack.c.l.b16 %v3260
    %v3356 = vunpack.c.h.b16 %v3260
    %v3357 = vunpack.c.l.b16 %v3261
    %v3358 = vunpack.c.h.b16 %v3261
    %v3359 = vunpack.c.l.b16 %v3262
    %v3360 = vunpack.c.h.b16 %v3262
    %v3361 = vunpack.c.l.b16 %v3263
    %v3362 = vunpack.c.h.b16 %v3263
    %v3363 = vunpack.c.l.b16 %v3264
    %v3364 = vunpack.c.h.b16 %v3264
    %v3365 = vunpack.c.l.b16 %v3265
    %v3366 = vunpack.c.h.b16 %v3265
    %v3367 = vunpack.c.l.b16 %v3266
    %v3368 = vunpack.c.h.b16 %v3266
    %v3369 = vunpack.c.l.b16 %v3267
    %v3370 = vunpack.c.h.b16 %v3267
    %v3371 = vunpack.c.l.b16 %v3268
    %v3372 = vunpack.c.h.b16 %v3268
    %v3373 = vunpack.c.l.b16 %v3269
    %v3374 = vunpack.c.h.b16 %v3269
    %v3375 = vunpack.c.l.b16 %v3270
    %v3376 = vunpack.c.h.b16 %v3270
    %v3377 = vunpack.c.l.b16 %v3271
    %v3378 = vunpack.c.h.b16 %v3271
    %v3379 = vunpack.c.l.b16 %v3272
    %v3380 = vunpack.c.h.b16 %v3272
    %v3381 = vpack.c.b16 %v3319, %v3317
    %v3382 = vpack.c.b16 %v3320, %v3318
    %v3383 = vpack.c.b16 %v3323, %v3321
    %v3384 = vpack.c.b16 %v3324, %v3322
    %v3385 = vpack.c.b16 %v3327, %v3325
    %v3386 = vpack.c.b16 %v3328, %v3326
    %v3387 = vpack.c.b16 %v3331, %v3329
    %v3388 = vpack.c.b16 %v3332, %v3330
    %v3389 = vpack.c.b16 %v3335, %v3333
    %v3390 = vpack.c.b16 %v3336, %v3334
    %v3391 = vpack.c.b16 %v3339, %v3337
    %v3392 = vpack.c.b16 %v3340, %v3338
    %v3393 = vpack.c.b16 %v3343, %v3341
    %v3394 = vpack.c.b16 %v3344, %v3342
    %v3395 = vpack.c.b16 %v3347, %v3345
    %v3396 = vpack.c.b16 %v3348, %v3346
    %v3397 = vpack.c.b16 %v3351, %v3349
    %v3398 = vpack.c.b16 %v3352, %v3350
    %v3399 = vpack.c.b16 %v3355, %v3353
    %v3400 = vpack.c.b16 %v3356, %v3354
    %v3401 = vpack.c.b16 %v3359, %v3357
    %v3402 = vpack.c.b16 %v3360, %v3358
    %v3403 = vpack.c.b16 %v3363, %v3361
    %v3404 = vpack.c.b16 %v3364, %v3362
    %v3405 = vpack.c.b16 %v3367, %v3365
    %v3406 = vpack.c.b16 %v3368, %v3366
    %v3407 = vpack.c.b16 %v3371, %v3369
    %v3408 = vpack.c.b16 %v3372, %v3370
    %v3409 = vpack.c.b16 %v3375, %v3373
    %v3410 = vpack.c.b16 %v3376, %v3374
    %v3411 = vpack.c.b16 %v3379, %v3377
    %v3412 = vpack.c.b16 %v3380, %v3378
    %3445 = vmatprep.subr.bf16.mxu0 %v3382
    %3446 = vmatpush1.bf16.msra.mxu0 %v3381
    %3447 = vmatprep.subr.bf16.mxu0 %v3384
    %3448 = vmatpush1.bf16.msra.mxu0 %v3383
    %3449 = vmatprep.subr.bf16.mxu0 %v3386
    %3450 = vmatpush1.bf16.msra.mxu0 %v3385
    %3451 = vmatprep.subr.bf16.mxu0 %v3388
    %3452 = vmatpush1.bf16.msra.mxu0 %v3387
    %3453 = vmatprep.subr.bf16.mxu0 %v3390
    %3454 = vmatpush1.bf16.msra.mxu0 %v3389
    %3455 = vmatprep.subr.bf16.mxu0 %v3392
    %3456 = vmatpush1.bf16.msra.mxu0 %v3391
    %3457 = vmatprep.subr.bf16.mxu0 %v3394
    %3458 = vmatpush1.bf16.msra.mxu0 %v3393
    %3459 = vmatprep.subr.bf16.mxu0 %v3396
    %3460 = vmatpush1.bf16.msra.mxu0 %v3395
    %3461 = vmatprep.subr.bf16.mxu0 %v3398
    %3462 = vmatpush1.bf16.msra.mxu0 %v3397
    %3463 = vmatprep.subr.bf16.mxu0 %v3400
    %3464 = vmatpush1.bf16.msra.mxu0 %v3399
    %3465 = vmatprep.subr.bf16.mxu0 %v3402
    %3466 = vmatpush1.bf16.msra.mxu0 %v3401
    %3467 = vmatprep.subr.bf16.mxu0 %v3404
    %3468 = vmatpush1.bf16.msra.mxu0 %v3403
    %3469 = vmatprep.subr.bf16.mxu0 %v3406
    %3470 = vmatpush1.bf16.msra.mxu0 %v3405
    %3471 = vmatprep.subr.bf16.mxu0 %v3408
    %3472 = vmatpush1.bf16.msra.mxu0 %v3407
    %3473 = vmatprep.subr.bf16.mxu0 %v3410
    %3474 = vmatpush1.bf16.msra.mxu0 %v3409
    %3475 = vmatprep.subr.bf16.mxu0 %v3412
    %3476 = vmatpush1.bf16.msra.mxu0 %v3411
    %3477 = vmatprep.mubr.bf16.mxu0 %v3240
    %3478 = vmatmul.mubr.bf16.gmra.mrb[0].mxu0 %v3239
    %v3479 = vpop.f32.mrb[0].mxu0
    %v3480 = vadd.f32 %v3278, %v3479
    %v3481 = vpop.f32.mrb[0].mxu0
    %v3482 = vadd.f32 %v3282, %v3481
    %v3483 = vpop.f32.mrb[0].mxu0
    %v3484 = vpop.f32.mrb[0].mxu0
    %3485 = vdwg.mxu0
    %v3486 = vmax.f32 %v3480, 0.0
    %v3487 = vmax.f32 %v3482, 0.0
    %v3488 = vpack.c.bf16 %v3486, %v3486
    %v3489 = vpack.c.bf16 %v3487, %v3487
    %v3490 = vld [vmem:[#allocation11] sm:$0xf]
    %v3491 = vld [vmem:[#allocation11 + $0x4] sm:$0xf]
    %v3492 = vld [vmem:[#allocation11 + $0x8] sm:$0xf]
    %v3493 = vld [vmem:[#allocation11 + $0xc] sm:$0xf]
    %v3494 = vld [vmem:[#allocation11 + $0x10] sm:$0xf]
    %v3495 = vld [vmem:[#allocation11 + $0x14] sm:$0xf]
    %v3496 = vld [vmem:[#allocation11 + $0x18] sm:$0xf]
    %v3497 = vld [vmem:[#allocation11 + $0x1c] sm:$0xf]
    %v3498 = vld [vmem:[#allocation11 + $0x20] sm:$0xf]
    %v3499 = vld [vmem:[#allocation11 + $0x24] sm:$0xf]
    %v3500 = vld [vmem:[#allocation11 + $0x28] sm:$0xf]
    %v3501 = vld [vmem:[#allocation11 + $0x2c] sm:$0xf]
    %v3502 = vld [vmem:[#allocation11 + $0x30] sm:$0xf]
    %v3503 = vld [vmem:[#allocation11 + $0x34] sm:$0xf]
    %v3504 = vld [vmem:[#allocation11 + $0x38] sm:$0xf]
    %v3505 = vld [vmem:[#allocation11 + $0x3c] sm:$0xf]
    %v3506 = vld [vmem:[#allocation11 + $0x40] sm:$0xf]
    %v3507 = vld [vmem:[#allocation11 + $0x44] sm:$0xf]
    %v3508 = vld [vmem:[#allocation11 + $0x48] sm:$0xf]
    %v3509 = vld [vmem:[#allocation11 + $0x4c] sm:$0xf]
    %v3510 = vld [vmem:[#allocation11 + $0x50] sm:$0xf]
    %v3511 = vld [vmem:[#allocation11 + $0x54] sm:$0xf]
    %v3512 = vld [vmem:[#allocation11 + $0x58] sm:$0xf]
    %v3513 = vld [vmem:[#allocation11 + $0x5c] sm:$0xf]
    %v3514 = vld [vmem:[#allocation11 + $0x60] sm:$0xf]
    %v3515 = vld [vmem:[#allocation11 + $0x64] sm:$0xf]
    %v3516 = vld [vmem:[#allocation11 + $0x68] sm:$0xf]
    %v3517 = vld [vmem:[#allocation11 + $0x6c] sm:$0xf]
    %v3518 = vld [vmem:[#allocation11 + $0x70] sm:$0xf]
    %v3519 = vld [vmem:[#allocation11 + $0x74] sm:$0xf]
    %v3520 = vld [vmem:[#allocation11 + $0x78] sm:$0xf]
    %v3521 = vld [vmem:[#allocation11 + $0x7c] sm:$0xf]
    %v3522 = vld [vmem:[#allocation13] sm:$0x1]
    %v3524 = vlaneseq
    %v3525 = vshrl.u32 %v3524, 7
    %v3526 = vsub.s32 0, %v3525
    %v3527 = vrot.slane %v3522, %v3526
    %v3561 = vunpack.c.l.b16 %v3490
    %v3562 = vunpack.c.l.b16 %v3491
    %v3563 = vunpack.c.l.b16 %v3492
    %v3564 = vunpack.c.l.b16 %v3493
    %v3565 = vunpack.c.l.b16 %v3494
    %v3566 = vunpack.c.l.b16 %v3495
    %v3567 = vunpack.c.l.b16 %v3496
    %v3568 = vunpack.c.l.b16 %v3497
    %v3569 = vunpack.c.l.b16 %v3498
    %v3570 = vunpack.c.l.b16 %v3499
    %v3571 = vunpack.c.l.b16 %v3500
    %v3572 = vunpack.c.l.b16 %v3501
    %v3573 = vunpack.c.l.b16 %v3502
    %v3574 = vunpack.c.l.b16 %v3503
    %v3575 = vunpack.c.l.b16 %v3504
    %v3576 = vunpack.c.l.b16 %v3505
    %v3577 = vunpack.c.l.b16 %v3506
    %v3578 = vunpack.c.l.b16 %v3507
    %v3579 = vunpack.c.l.b16 %v3508
    %v3580 = vunpack.c.l.b16 %v3509
    %v3581 = vunpack.c.l.b16 %v3510
    %v3582 = vunpack.c.l.b16 %v3511
    %v3583 = vunpack.c.l.b16 %v3512
    %v3584 = vunpack.c.l.b16 %v3513
    %v3585 = vunpack.c.l.b16 %v3514
    %v3586 = vunpack.c.l.b16 %v3515
    %v3587 = vunpack.c.l.b16 %v3516
    %v3588 = vunpack.c.l.b16 %v3517
    %v3589 = vunpack.c.l.b16 %v3518
    %v3590 = vunpack.c.l.b16 %v3519
    %v3591 = vunpack.c.l.b16 %v3520
    %v3592 = vunpack.c.l.b16 %v3521
    %v3593 = vpack.c.b16 %v3562, %v3561
    %v3594 = vpack.c.b16 %v3564, %v3563
    %v3595 = vpack.c.b16 %v3566, %v3565
    %v3596 = vpack.c.b16 %v3568, %v3567
    %v3597 = vpack.c.b16 %v3570, %v3569
    %v3598 = vpack.c.b16 %v3572, %v3571
    %v3599 = vpack.c.b16 %v3574, %v3573
    %v3600 = vpack.c.b16 %v3576, %v3575
    %v3601 = vpack.c.b16 %v3578, %v3577
    %v3602 = vpack.c.b16 %v3580, %v3579
    %v3603 = vpack.c.b16 %v3582, %v3581
    %v3604 = vpack.c.b16 %v3584, %v3583
    %v3605 = vpack.c.b16 %v3586, %v3585
    %v3606 = vpack.c.b16 %v3588, %v3587
    %v3607 = vpack.c.b16 %v3590, %v3589
    %v3608 = vpack.c.b16 %v3592, %v3591
    %3625 = vmatprep.subr.bf16.mxu0 0
    %3626 = vmatpush1.bf16.msra.mxu0 %v3593
    %3627 = vmatprep.subr.bf16.mxu0 0
    %3628 = vmatpush1.bf16.msra.mxu0 %v3594
    %3629 = vmatprep.subr.bf16.mxu0 0
    %3630 = vmatpush1.bf16.msra.mxu0 %v3595
    %3631 = vmatprep.subr.bf16.mxu0 0
    %3632 = vmatpush1.bf16.msra.mxu0 %v3596
    %3633 = vmatprep.subr.bf16.mxu0 0
    %3634 = vmatpush1.bf16.msra.mxu0 %v3597
    %3635 = vmatprep.subr.bf16.mxu0 0
    %3636 = vmatpush1.bf16.msra.mxu0 %v3598
    %3637 = vmatprep.subr.bf16.mxu0 0
    %3638 = vmatpush1.bf16.msra.mxu0 %v3599
    %3639 = vmatprep.subr.bf16.mxu0 0
    %3640 = vmatpush1.bf16.msra.mxu0 %v3600
    %3641 = vmatprep.subr.bf16.mxu0 0
    %3642 = vmatpush1.bf16.msra.mxu0 %v3601
    %3643 = vmatprep.subr.bf16.mxu0 0
    %3644 = vmatpush1.bf16.msra.mxu0 %v3602
    %3645 = vmatprep.subr.bf16.mxu0 0
    %3646 = vmatpush1.bf16.msra.mxu0 %v3603
    %3647 = vmatprep.subr.bf16.mxu0 0
    %3648 = vmatpush1.bf16.msra.mxu0 %v3604
    %3649 = vmatprep.subr.bf16.mxu0 0
    %3650 = vmatpush1.bf16.msra.mxu0 %v3605
    %3651 = vmatprep.subr.bf16.mxu0 0
    %3652 = vmatpush1.bf16.msra.mxu0 %v3606
    %3653 = vmatprep.subr.bf16.mxu0 0
    %3654 = vmatpush1.bf16.msra.mxu0 %v3607
    %3655 = vmatprep.subr.bf16.mxu0 0
    %3656 = vmatpush1.bf16.msra.mxu0 %v3608
    %3657 = vmatprep.mubr.bf16.mxu0 %v3489
    %3658 = vmatmul.mubr.bf16.gmra.mrb[0].mxu0 %v3488
    %v3659 = vpop.f32.mrb[0].mxu0
    %v3660 = vadd.f32 %v3527, %v3659
    %v3661 = vpop.f32.mrb[0].mxu0
    %v3662 = vpop.f32.mrb[0].mxu0
    %v3663 = vpop.f32.mrb[0].mxu0
    %3664 = vdwg.mxu0
    %v3665 = vpack.c.bf16 %v3660, %v3660
    %3666 = vst [vmem:[#allocation14] sm:$0xf] %v3665
    // Predicated region
    $region58: #{tpu_custom_call.1} parent=1 // pred_check
      _
    $region59: #{tpu_custom_call.1} parent=1 // pred_check_branch
      %3668 = sbr.rel (0) target = $region61
    $region60: #{tpu_custom_call.1} parent=1 // pred_region
      %s3670 = ssub.s32 64, 64
      %3671 = vsyncadd [#allocation4], %s3670
      %s3673 = sshll.u32 [#allocation14], 4
      %s3674 = int_to_ptr.vmem [resolvable:$true] %s3673
      %3676 = dma.vmem_to_hbm [thread:$0]  %s3674, 64, %s7, [#allocation4]
    $region61: #{tpu_custom_call.1} parent=1 // pred_fallthru
      _
    // Predicated region
    $region62: #{tpu_custom_call.1} parent=1 // pred_check
      _
    $region63: #{tpu_custom_call.1} parent=1 // pred_check_branch
      %3678 = sbr.rel (0) target = $region65
    $region64: #{tpu_custom_call.1} parent=1 // pred_region
      %3679 = dma.done [#allocation4], 64
    $region65: #{tpu_custom_call.1} parent=1 // pred_fallthru
      _
    %3680 = vsyncpa [#allocation3], 1
    %3681 = vsyncpa [#allocation6], 1
    %3682 = vsyncpa [#allocation9], 1
    %3683 = vsyncpa [#allocation12], 1
    %3684 = vsyncpa [#allocation4], 1

</llo_original>
